<compile_context>
chip_gen: v6e
topology: v6e:2x2x1
jax: 0.10.0
libtpu: 0.0.40
codegen_flags: <defaults>
</compile_context>

<pallas_src>
from functools import partial

import jax
import jax.numpy as jnp
from jax.experimental import pallas as pl
from jax.experimental.pallas import tpu as pltpu


def _erf_f32(x):
    """Abramowitz & Stegun 7.1.26 rational erf approximation (|err| < 1.5e-7).

    Uses only exp (EUP slot) and VPU elementwise ops — safe to lower in Mosaic.
    """
    a1 = 0.254829592
    a2 = -0.284496736
    a3 = 1.421413741
    a4 = -1.453152027
    a5 = 1.061405429
    p = 0.3275911
    sgn = jnp.where(x >= 0.0, 1.0, -1.0)
    ax = jnp.abs(x)
    t = 1.0 / (1.0 + p * ax)
    poly = ((((a5 * t + a4) * t + a3) * t + a2) * t + a1) * t
    y = 1.0 - poly * jnp.exp(-ax * ax)
    return sgn * y


def _gelu_exact(x):
    # PyTorch nn.GELU() default: 0.5 * x * (1 + erf(x / sqrt(2)))
    return 0.5 * x * (1.0 + _erf_f32(x * 0.7071067811865476))


def _fcu_down_kernel(x_ref, w_ref, b_ref, g_ref, beta_ref, gm_ref, eb_ref, o_ref):
    # x_ref: (tile, R*Cin)  — R consecutive tokens folded into the lane dim.
    # w_ref: (R*Cin, R*Cout) block-diagonal 1x1x1-conv weight (kron(I_R, W)).
    # gm_ref: (R*Cout, R) group-mean matrix, eb_ref: (R, R*Cout) group-broadcast.
    x = x_ref[...].astype(jnp.float32)

    # 1x1x1 Conv3d == per-token matmul over channels, for all R folded tokens
    # at once (block-diagonal weight keeps the output lane-dense).
    y = jnp.dot(x, w_ref[...].astype(jnp.float32),
                preferred_element_type=jnp.float32) + b_ref[...]

    # LayerNorm per token (eps=1e-6, biased variance) over each Cout-lane group.
    # Grouped mean / variance via tiny MXU matmuls — no cross-lane reshapes.
    mu = jnp.dot(y, gm_ref[...], preferred_element_type=jnp.float32)       # (tile, R)
    mu_b = jnp.dot(mu, eb_ref[...], preferred_element_type=jnp.float32)    # (tile, R*Cout)
    d = y - mu_b
    var = jnp.dot(d * d, gm_ref[...], preferred_element_type=jnp.float32)  # (tile, R)
    var_b = jnp.dot(var, eb_ref[...], preferred_element_type=jnp.float32)  # (tile, R*Cout)

    z = d * jax.lax.rsqrt(var_b + 1e-6) * g_ref[...] + beta_ref[...]

    # Exact erf-GELU (PyTorch nn.GELU default).
    o_ref[...] = _gelu_exact(z)


def _choose_tile(Mf, row_bytes, max_tile_bytes=4 << 20):
    """Rows per grid step: multiple of 8, fits a VMEM budget, >=2 grid steps."""
    tile = max(8, min(Mf, max_tile_bytes // max(row_bytes, 1)))
    tile = max(8, (tile // 8) * 8)
    if Mf > 8 and tile >= Mf:
        # Keep at least 2 grid steps so both v7x TensorCores get work and the
        # DMA pipeline (double buffering) stays alive.
        tile = max(8, (((Mf + 1) // 2) // 8) * 8)
    return tile


@partial(jax.jit, static_argnums=(6,))
def fcu_down3d(x, x_t, w, b, gamma, beta, dw_stride):
    """x: (B, Cin, D, H, W), x_t: (B, T, Cout).  Returns (B, N+1, Cout)."""
    B, Cin, D, H, W = x.shape
    s = dw_stride
    Cout = w.shape[1]
    Dp, Hp, Wp = D // s, H // s, W // s
    N = Dp * Hp * Wp
    M = B * N

    # ---- 1) AvgPool3d FIRST (linear, commutes with the 1x1x1 conv) on the
    #         native NCDHW layout: s^3 less data through the transpose/kernel.
    xp = x.reshape(B, Cin, Dp, s, Hp, s, Wp, s).mean(axis=(3, 5, 7))  # (B,Cin,Dp,Hp,Wp)

    # ---- 2) token-major, channels-last: (M, Cin)  (keep original dtype)
    xt = xp.reshape(B, Cin, N).transpose(0, 2, 1).reshape(M, Cin)

    # ---- 3) lane-density fold: R consecutive tokens per row so R*Cout is a
    #         multiple of 128 (unmasked, lane-dense output stores).
    if Cout < 128 and 128 % Cout == 0:
        R = 128 // Cout
    else:
        R = 1
    RCin, RCout = R * Cin, R * Cout

    in_itemsize = jnp.dtype(xt.dtype).itemsize
    row_bytes = max(RCin, 128) * in_itemsize + max(RCout, 128) * 4
    Mf = pl.cdiv(M, R)
    tile = _choose_tile(Mf, row_bytes)
    Mf_pad = pl.cdiv(Mf, tile) * tile
    Mp = Mf_pad * R

    if Mp > M:  # pad at token granularity; padded rows are sliced off below
        xt = jnp.concatenate([xt, jnp.zeros((Mp - M, Cin), xt.dtype)], axis=0)
    xf = xt.reshape(Mf_pad, RCin)  # contiguous fold, free

    # Block-diagonal conv weight + tiled affine params (tiny, built once).
    w_bd = jnp.kron(jnp.eye(R, dtype=w.dtype), w)          # (R*Cin, R*Cout)
    b_t = jnp.tile(b, R).reshape(1, RCout).astype(jnp.float32)
    g_t = jnp.tile(gamma, R).reshape(1, RCout).astype(jnp.float32)
    be_t = jnp.tile(beta, R).reshape(1, RCout).astype(jnp.float32)

    # Group-mean (RCout, R) and group-broadcast (R, RCout) matrices for the
    # per-token LayerNorm over each Cout-lane group.
    group = jnp.arange(RCout) // Cout
    gm = (group[:, None] == jnp.arange(R)[None, :]).astype(jnp.float32) / Cout
    eb = (jnp.arange(R)[:, None] == group[None, :]).astype(jnp.float32)

    grid = (Mf_pad // tile,)
    out_f = pl.pallas_call(
        _fcu_down_kernel,
        out_shape=jax.ShapeDtypeStruct((Mf_pad, RCout), jnp.float32),
        grid=grid,
        in_specs=[
            pl.BlockSpec((tile, RCin), lambda i: (i, 0)),
            pl.BlockSpec((RCin, RCout), lambda i: (0, 0)),
            pl.BlockSpec((1, RCout), lambda i: (0, 0)),
            pl.BlockSpec((1, RCout), lambda i: (0, 0)),
            pl.BlockSpec((1, RCout), lambda i: (0, 0)),
            pl.BlockSpec((RCout, R), lambda i: (0, 0)),
            pl.BlockSpec((R, RCout), lambda i: (0, 0)),
        ],
        out_specs=pl.BlockSpec((tile, RCout), lambda i: (i, 0)),
        compiler_params=pltpu.CompilerParams(
            dimension_semantics=("parallel",),
            vmem_limit_bytes=32 * 1024 * 1024),
    )(xf, w_bd, b_t, g_t, be_t, gm, eb)

    # Undo the lane fold (exact row-major unfold), drop padding, reshape.
    y = out_f.reshape(Mp, Cout)[:M].reshape(B, N, Cout).astype(x_t.dtype)

    # Class-token concat (thin glue; output tensor is small relative to x).
    cls_tok = x_t[:, 0:1, :]
    return jnp.concatenate([cls_tok, y], axis=1)


def _reference(x, x_t, w, b, gamma, beta, s):
    """Pure-JAX reference mirroring the PyTorch forward (conv -> pool -> LN -> GELU)."""
    B, Cin, D, H, W = x.shape
    Cout = w.shape[1]
    y = jnp.einsum("bcdhw,ck->bkdhw", x, w) + b[None, :, None, None, None]
    Dp, Hp, Wp = D // s, H // s, W // s
    y = y.reshape(B, Cout, Dp, s, Hp, s, Wp, s).mean(axis=(3, 5, 7))
    y = y.reshape(B, Cout, Dp * Hp * Wp).transpose(0, 2, 1)
    mu = y.mean(-1, keepdims=True)
    var = ((y - mu) ** 2).mean(-1, keepdims=True)
    y = (y - mu) / jnp.sqrt(var + 1e-6) * gamma + beta
    y = jax.nn.gelu(y, approximate=False)
    return jnp.concatenate([x_t[:, 0:1, :], y], axis=1)


if __name__ == "__main__":
    key = jax.random.PRNGKey(0)
    B, Cin, Cout = 2, 4, 32
    D = H = W = 16
    s = 2                                   # dw_stride
    N = (D // s) * (H // s) * (W // s)      # 512 patch tokens
    T = N + 1                               # transformer tokens incl. cls

    k1, k2, k3, k4, k5, k6 = jax.random.split(key, 6)
    x = jax.random.normal(k1, (B, Cin, D, H, W), jnp.float32)
    x_t = jax.random.normal(k2, (B, T, Cout), jnp.float32)
    # Conv3d(kernel_size=1) weight is (Cout, Cin, 1, 1, 1); stored here as (Cin, Cout).
    w = jax.random.normal(k3, (Cin, Cout), jnp.float32) * 0.1
    b = jax.random.normal(k4, (Cout,), jnp.float32) * 0.1
    gamma = 1.0 + 0.1 * jax.random.normal(k5, (Cout,), jnp.float32)
    beta = 0.1 * jax.random.normal(k6, (Cout,), jnp.float32)

    out = fcu_down3d(x, x_t, w, b, gamma, beta, s)
    out = jax.block_until_ready(out)

    ref = _reference(x, x_t, w, b, gamma, beta, s)
    assert out.shape == (B, N + 1, Cout), out.shape
    assert jnp.allclose(out, ref, rtol=1e-4, atol=1e-4), float(
        jnp.max(jnp.abs(out - ref)))

    print("KERNEL_OK")
</pallas_src>

<mosaic_0001>
module attributes {stable_mosaic.version = 11 : i64} {
  func.func @_fcu_down_kernel(%arg0: i32, %arg1: memref<128x16xf32, #tpu.memory_space<vmem>>, %arg2: memref<16x128xf32, #tpu.memory_space<vmem>>, %arg3: memref<1x128xf32, #tpu.memory_space<vmem>>, %arg4: memref<1x128xf32, #tpu.memory_space<vmem>>, %arg5: memref<1x128xf32, #tpu.memory_space<vmem>>, %arg6: memref<128x4xf32, #tpu.memory_space<vmem>>, %arg7: memref<4x128xf32, #tpu.memory_space<vmem>>, %arg8: memref<128x128xf32, #tpu.memory_space<vmem>>) attributes {dimension_semantics = [#tpu.dimension_semantics<parallel>], iteration_bounds = array<i64: 2>, scalar_prefetch = 0 : i64, scratch_operands = 0 : i64, tpu.core_type = #tpu.core_type<tc>, window_params = [{transform_indices = @transform_0, window_bounds = array<i64: 128, 16>}, {pipeline_mode = #tpu.pipeline_mode<synchronous>, transform_indices = @transform_1, window_bounds = array<i64: 16, 128>}, {pipeline_mode = #tpu.pipeline_mode<synchronous>, transform_indices = @transform_2, window_bounds = array<i64: 1, 128>}, {pipeline_mode = #tpu.pipeline_mode<synchronous>, transform_indices = @transform_3, window_bounds = array<i64: 1, 128>}, {pipeline_mode = #tpu.pipeline_mode<synchronous>, transform_indices = @transform_4, window_bounds = array<i64: 1, 128>}, {pipeline_mode = #tpu.pipeline_mode<synchronous>, transform_indices = @transform_5, window_bounds = array<i64: 128, 4>}, {pipeline_mode = #tpu.pipeline_mode<synchronous>, transform_indices = @transform_6, window_bounds = array<i64: 4, 128>}, {transform_indices = @transform_7, window_bounds = array<i64: 128, 128>}]} {
    %c0 = arith.constant 0 : index
    %c0_0 = arith.constant 0 : index
    %0 = vector.load %arg1[%c0, %c0_0] : memref<128x16xf32, #tpu.memory_space<vmem>>, vector<128x16xf32>
    %c0_1 = arith.constant 0 : index
    %c0_2 = arith.constant 0 : index
    %1 = vector.load %arg2[%c0_1, %c0_2] : memref<16x128xf32, #tpu.memory_space<vmem>>, vector<16x128xf32>
    %cst = arith.constant dense<0.000000e+00> : vector<128x128xf32>
    %2 = tpu.matmul %0, %1, %cst {dimension_numbers = #tpu.dot_dimension_numbers<[1], [0], [0], [1], [0, 0, 1, 1], [], []>} : vector<128x16xf32>, vector<16x128xf32>, vector<128x128xf32> -> vector<128x128xf32>
    %c0_3 = arith.constant 0 : index
    %c0_4 = arith.constant 0 : index
    %3 = vector.load %arg3[%c0_3, %c0_4] : memref<1x128xf32, #tpu.memory_space<vmem>>, vector<1x128xf32>
    %4 = vector.broadcast %3 : vector<1x128xf32> to vector<128x128xf32>
    %5 = arith.addf %2, %4 : vector<128x128xf32>
    %c0_5 = arith.constant 0 : index
    %c0_6 = arith.constant 0 : index
    %6 = vector.load %arg6[%c0_5, %c0_6] : memref<128x4xf32, #tpu.memory_space<vmem>>, vector<128x4xf32>
    %cst_7 = arith.constant dense<0.000000e+00> : vector<128x4xf32>
    %7 = tpu.matmul %5, %6, %cst_7 {dimension_numbers = #tpu.dot_dimension_numbers<[1], [0], [0], [1], [0, 0, 1, 1], [], []>} : vector<128x128xf32>, vector<128x4xf32>, vector<128x4xf32> -> vector<128x4xf32>
    %c0_8 = arith.constant 0 : index
    %c0_9 = arith.constant 0 : index
    %8 = vector.load %arg7[%c0_8, %c0_9] : memref<4x128xf32, #tpu.memory_space<vmem>>, vector<4x128xf32>
    %cst_10 = arith.constant dense<0.000000e+00> : vector<128x128xf32>
    %9 = tpu.matmul %7, %8, %cst_10 {dimension_numbers = #tpu.dot_dimension_numbers<[1], [0], [0], [1], [0, 0, 1, 1], [], []>} : vector<128x4xf32>, vector<4x128xf32>, vector<128x128xf32> -> vector<128x128xf32>
    %10 = arith.subf %5, %9 : vector<128x128xf32>
    %11 = arith.mulf %10, %10 : vector<128x128xf32>
    %c0_11 = arith.constant 0 : index
    %c0_12 = arith.constant 0 : index
    %12 = vector.load %arg6[%c0_11, %c0_12] : memref<128x4xf32, #tpu.memory_space<vmem>>, vector<128x4xf32>
    %cst_13 = arith.constant dense<0.000000e+00> : vector<128x4xf32>
    %13 = tpu.matmul %11, %12, %cst_13 {dimension_numbers = #tpu.dot_dimension_numbers<[1], [0], [0], [1], [0, 0, 1, 1], [], []>} : vector<128x128xf32>, vector<128x4xf32>, vector<128x4xf32> -> vector<128x4xf32>
    %c0_14 = arith.constant 0 : index
    %c0_15 = arith.constant 0 : index
    %14 = vector.load %arg7[%c0_14, %c0_15] : memref<4x128xf32, #tpu.memory_space<vmem>>, vector<4x128xf32>
    %cst_16 = arith.constant dense<0.000000e+00> : vector<128x128xf32>
    %15 = tpu.matmul %13, %14, %cst_16 {dimension_numbers = #tpu.dot_dimension_numbers<[1], [0], [0], [1], [0, 0, 1, 1], [], []>} : vector<128x4xf32>, vector<4x128xf32>, vector<128x128xf32> -> vector<128x128xf32>
    %cst_17 = arith.constant 9.99999997E-7 : f32
    %16 = vector.broadcast %cst_17 : f32 to vector<128x128xf32>
    %17 = arith.addf %15, %16 : vector<128x128xf32>
    %18 = math.rsqrt %17 : vector<128x128xf32>
    %19 = arith.mulf %10, %18 : vector<128x128xf32>
    %c0_18 = arith.constant 0 : index
    %c0_19 = arith.constant 0 : index
    %20 = vector.load %arg4[%c0_18, %c0_19] : memref<1x128xf32, #tpu.memory_space<vmem>>, vector<1x128xf32>
    %21 = vector.broadcast %20 : vector<1x128xf32> to vector<128x128xf32>
    %22 = arith.mulf %19, %21 : vector<128x128xf32>
    %c0_20 = arith.constant 0 : index
    %c0_21 = arith.constant 0 : index
    %23 = vector.load %arg5[%c0_20, %c0_21] : memref<1x128xf32, #tpu.memory_space<vmem>>, vector<1x128xf32>
    %24 = vector.broadcast %23 : vector<1x128xf32> to vector<128x128xf32>
    %25 = arith.addf %22, %24 : vector<128x128xf32>
    %cst_22 = arith.constant 5.000000e-01 : f32
    %26 = vector.broadcast %cst_22 : f32 to vector<128x128xf32>
    %27 = arith.mulf %26, %25 : vector<128x128xf32>
    %cst_23 = arith.constant 0.707106769 : f32
    %28 = vector.broadcast %cst_23 : f32 to vector<128x128xf32>
    %29 = arith.mulf %25, %28 : vector<128x128xf32>
    %cst_24 = arith.constant 0.000000e+00 : f32
    %30 = vector.broadcast %cst_24 : f32 to vector<128x128xf32>
    %31 = arith.cmpf oge, %29, %30 : vector<128x128xf32>
    %cst_25 = arith.constant 1.000000e+00 : f32
    %cst_26 = arith.constant -1.000000e+00 : f32
    %32 = vector.broadcast %cst_25 : f32 to vector<128x128xf32>
    %33 = vector.broadcast %cst_26 : f32 to vector<128x128xf32>
    %34 = arith.select %31, %32, %33 : vector<128x128xi1>, vector<128x128xf32>
    %35 = math.absf %29 : vector<128x128xf32>
    %cst_27 = arith.constant 0.327591091 : f32
    %36 = vector.broadcast %cst_27 : f32 to vector<128x128xf32>
    %37 = arith.mulf %36, %35 : vector<128x128xf32>
    %cst_28 = arith.constant 1.000000e+00 : f32
    %38 = vector.broadcast %cst_28 : f32 to vector<128x128xf32>
    %39 = arith.addf %38, %37 : vector<128x128xf32>
    %cst_29 = arith.constant 1.000000e+00 : f32
    %40 = vector.broadcast %cst_29 : f32 to vector<128x128xf32>
    %41 = arith.divf %40, %39 : vector<128x128xf32>
    %cst_30 = arith.constant 1.06140542 : f32
    %42 = vector.broadcast %cst_30 : f32 to vector<128x128xf32>
    %43 = arith.mulf %42, %41 : vector<128x128xf32>
    %cst_31 = arith.constant -1.45315206 : f32
    %44 = vector.broadcast %cst_31 : f32 to vector<128x128xf32>
    %45 = arith.addf %43, %44 : vector<128x128xf32>
    %46 = arith.mulf %45, %41 : vector<128x128xf32>
    %cst_32 = arith.constant 1.42141378 : f32
    %47 = vector.broadcast %cst_32 : f32 to vector<128x128xf32>
    %48 = arith.addf %46, %47 : vector<128x128xf32>
    %49 = arith.mulf %48, %41 : vector<128x128xf32>
    %cst_33 = arith.constant -0.284496725 : f32
    %50 = vector.broadcast %cst_33 : f32 to vector<128x128xf32>
    %51 = arith.addf %49, %50 : vector<128x128xf32>
    %52 = arith.mulf %51, %41 : vector<128x128xf32>
    %cst_34 = arith.constant 0.254829586 : f32
    %53 = vector.broadcast %cst_34 : f32 to vector<128x128xf32>
    %54 = arith.addf %52, %53 : vector<128x128xf32>
    %55 = arith.mulf %54, %41 : vector<128x128xf32>
    %cst_35 = arith.constant 0.000000e+00 : f32
    %56 = vector.broadcast %cst_35 : f32 to vector<128x128xf32>
    %57 = arith.subf %56, %35 : vector<128x128xf32>
    %58 = arith.mulf %57, %35 : vector<128x128xf32>
    %59 = math.exp %58 : vector<128x128xf32>
    %60 = arith.mulf %55, %59 : vector<128x128xf32>
    %cst_36 = arith.constant 1.000000e+00 : f32
    %61 = vector.broadcast %cst_36 : f32 to vector<128x128xf32>
    %62 = arith.subf %61, %60 : vector<128x128xf32>
    %63 = arith.mulf %34, %62 : vector<128x128xf32>
    %cst_37 = arith.constant 1.000000e+00 : f32
    %64 = vector.broadcast %cst_37 : f32 to vector<128x128xf32>
    %65 = arith.addf %64, %63 : vector<128x128xf32>
    %66 = arith.mulf %27, %65 : vector<128x128xf32>
    %c0_38 = arith.constant 0 : index
    %c0_39 = arith.constant 0 : index
    %67 = vector.load %arg8[%c0_38, %c0_39] : memref<128x128xf32, #tpu.memory_space<vmem>>, vector<128x128xf32>
    tpu.vector_store %arg8[%c0_38, %c0_39], %66 {strides = array<i32>} : memref<128x128xf32, #tpu.memory_space<vmem>>, vector<128x128xf32>,
    return
  }
  func.func @transform_0(%arg0: i32) -> (i32, i32) {
    %c0_i32 = arith.constant 0 : i32
    %c0_i32_0 = arith.constant 0 : i32
    return %arg0, %c0_i32 : i32, i32
  }
  func.func @transform_1(%arg0: i32) -> (i32, i32) {
    %c0_i32 = arith.constant 0 : i32
    %c0_i32_0 = arith.constant 0 : i32
    %c0_i32_1 = arith.constant 0 : i32
    return %c0_i32, %c0_i32_0 : i32, i32
  }
  func.func @transform_2(%arg0: i32) -> (i32, i32) {
    %c0_i32 = arith.constant 0 : i32
    %c0_i32_0 = arith.constant 0 : i32
    %c0_i32_1 = arith.constant 0 : i32
    return %c0_i32, %c0_i32_0 : i32, i32
  }
  func.func @transform_3(%arg0: i32) -> (i32, i32) {
    %c0_i32 = arith.constant 0 : i32
    %c0_i32_0 = arith.constant 0 : i32
    %c0_i32_1 = arith.constant 0 : i32
    return %c0_i32, %c0_i32_0 : i32, i32
  }
  func.func @transform_4(%arg0: i32) -> (i32, i32) {
    %c0_i32 = arith.constant 0 : i32
    %c0_i32_0 = arith.constant 0 : i32
    %c0_i32_1 = arith.constant 0 : i32
    return %c0_i32, %c0_i32_0 : i32, i32
  }
  func.func @transform_5(%arg0: i32) -> (i32, i32) {
    %c0_i32 = arith.constant 0 : i32
    %c0_i32_0 = arith.constant 0 : i32
    %c0_i32_1 = arith.constant 0 : i32
    return %c0_i32, %c0_i32_0 : i32, i32
  }
  func.func @transform_6(%arg0: i32) -> (i32, i32) {
    %c0_i32 = arith.constant 0 : i32
    %c0_i32_0 = arith.constant 0 : i32
    %c0_i32_1 = arith.constant 0 : i32
    return %c0_i32, %c0_i32_0 : i32, i32
  }
  func.func @transform_7(%arg0: i32) -> (i32, i32) {
    %c0_i32 = arith.constant 0 : i32
    %c0_i32_0 = arith.constant 0 : i32
    return %arg0, %c0_i32 : i32, i32
  }
}

</mosaic_0001>

<llo_original>
// kernel: tile.18
$region0: #{tile.18}
  #allocation0 [shape = 's32[1]{0}', space=sflag, size = 0x4, scoped, tag = 'scoped memory for tile.18']
  %s0 = inlined_call_operand.vmem [shape: f32[32], index: 0, kind: input, shape index: {}]
  %s1 = inlined_call_operand.vmem [shape: f32[4,32], index: 1, kind: output, shape index: {}]
  // Predicated region
  $region2: #{tile.18} parent=0 // pred_check
    _
  $region3: #{tile.18} parent=0 // pred_check_branch
    %3 = sbr.rel (0) target = $region5
  $region4: #{tile.18} parent=0 // pred_region
    _
  $region5: #{tile.18} parent=0 // pred_fallthru
    _
  %v4 = vld [vmem:[%s0] ss:$0 sm:$0xff]
  %5 = vst [vmem:[%s1] sm:$0xf] %v4

// kernel: tile.19
$region0: #{tile.19}
  %s0 = inlined_call_operand.vmem [shape: f32[4,32], index: 0, kind: input, shape index: {}]
  %s1 = inlined_call_operand.vmem [shape: f32[1,128], index: 1, kind: output, shape index: {}]
  $region1: #{tile.19} parent=0
    #allocation0 [shape = 'u8[4096]{0}', space=vmem, size = 0x1000, scoped, tag = 'scoped mem for output reshape']
    #allocation1 [shape = 'u8[4096]{0}', space=vmem, size = 0x1000, scoped, tag = 'scoped mem for input reshape']
    %s3 = sshll.u32 1, 4
    %s4 = ssub.s32 %s3, 1
    %v5 = vld [vmem:[%s0] sm:%s4]
    %6 = vst [vmem:[#allocation1] sm:%s4] %v5
    %v7 = vld [vmem:[#allocation1] sm:$0x1]
    %vm8 = vcmask 261120
    %9 = vst.msk [vmem:[#allocation0] sm:$0x1] %vm8, %v7
    %s10 = scalar_lea.vmem [#allocation1], 3
    %v11 = vld [vmem:[%s10] sm:$0x1]
    %12 = vrot.lane.b32.xlu0 %v11, 96
    %v13 = vpop.permute.xlu0 %12
    %vm14 = vcmask 1048320
    %15 = vst.msk [vmem:[#allocation0] sm:$0x1] %vm14, %v13
    %s16 = scalar_lea.vmem [#allocation1], 2
    %v17 = vld [vmem:[%s16] sm:$0x1]
    %18 = vrot.lane.b32.xlu0 %v17, 64
    %v19 = vpop.permute.xlu0 %18
    %vm20 = vcmask 785920
    %21 = vst.msk [vmem:[#allocation0] sm:$0x1] %vm20, %v19
    %s22 = scalar_lea.vmem [#allocation1], 1
    %v23 = vld [vmem:[%s22] sm:$0x1]
    %24 = vrot.lane.b32.xlu0 %v23, 32
    %v25 = vpop.permute.xlu0 %24
    %vm26 = vcmask 523520
    %27 = vst.msk [vmem:[#allocation0] sm:$0x1] %vm26, %v25
    %s29 = sshll.u32 1, 1
    %s30 = ssub.s32 %s29, 1
    %v32 = vld [vmem:[#allocation0] sm:%s30]
    %s33 = sshll.u32 1, 1
    %s34 = ssub.s32 %s33, 1
    %35 = vst [vmem:[%s1] sm:%s34] %v32

// kernel: fcu_down3d.1
$region0: #{fcu_down3d.1}
  #allocation0 [shape = 'u32[]', space=smem, size = 0x4, offset = 0x4, fixed_abs, tag = 'smem constant byte address 0x4 - core index']
  #allocation1 [shape = 'u32[144,128]{1,0:T(1,128)}', space=vmem, size = 0x12000, scoped, tag = 'internal scratch']
  %s0 = inlined_call_operand.vmem [shape: f32[256,16], index: 0, kind: input, shape index: {}]
  %s1 = inlined_call_operand.vmem [shape: f32[16,128], index: 1, kind: input, shape index: {}]
  %s2 = inlined_call_operand.vmem [shape: f32[1,128], index: 2, kind: input, shape index: {}]
  %s3 = inlined_call_operand.vmem [shape: f32[1,128], index: 3, kind: input, shape index: {}]
  %s4 = inlined_call_operand.vmem [shape: f32[1,128], index: 4, kind: input, shape index: {}]
  %s5 = inlined_call_operand.vmem [shape: f32[128,4], index: 5, kind: input, shape index: {}]
  %s6 = inlined_call_operand.vmem [shape: f32[4,128], index: 6, kind: input, shape index: {}]
  %s7 = inlined_call_operand.vmem [shape: f32[256,128], index: 7, kind: output, shape index: {}]
  %s8 = sld [smem:[#allocation0]]
  $region61: #{fcu_down3d.1} parent=0
    _
  %s10 = ssub.s32 1, %s8
  %s11 = scalar_select 0, %s10, %s8
  loop: start=0, step=1, limit=4
  $region2: #{fcu_down3d.1} parent=0 // loop_pre_header
    _
  $region3: #{fcu_down3d.1} parent=0 // loop_header
    %s13 = sphi 0, %s17
    %p14 = scmp.ge.s32.totalorder %s13, 4
    %s23 = sphi 0, %s25
    %s26 = sphi 0, %s23
    %s27 = sphi 0, %s26
    %s43 = sphi 0, %s27
    %s47 = sphi 0, %s47
    %s49 = sphi 0, %s47
    %s50 = sphi 0, %s49
    %s64 = sphi 0, %s50
    %s68 = sphi 0, %s68
    %s70 = sphi 0, %s68
    %s71 = sphi 0, %s70
    %s85 = sphi 0, %s71
    %s89 = sphi 0, %s89
    %s91 = sphi 0, %s89
    %s92 = sphi 0, %s91
    %s106 = sphi 0, %s92
    %s110 = sphi 0, %s110
    %s112 = sphi 0, %s110
    %s113 = sphi 0, %s112
    %s127 = sphi 0, %s113
    %s131 = sphi 0, %s131
    %s133 = sphi 0, %s131
    %s134 = sphi 0, %s133
    %s148 = sphi 0, %s134
    %s152 = sphi 0, %s152
    %s154 = sphi 0, %s152
    %s155 = sphi 0, %s154
    %s169 = sphi 0, %s155
    %s175 = sphi 0, %s177
    %s178 = sphi 0, %s175
    %s179 = sphi 0, %s178
    %s195 = sphi 0, %s179
  $region4: #{fcu_down3d.1} parent=0 // loop_header_branch
    %16 = sbr.rel (%p14) target = $region8
  $region5: #{fcu_down3d.1} parent=0 // loop_body
    %s18 = ssub.s32 %s13, 1
    %s19 = ssub.s32 %s13, 2
    %s20 = sadd.s32 %s13, 1
    %s21 = ssub.s32 %s13, %s20
    %p22 = scmp.eq.s32.totalorder %s21, 0
    %s24 = sadd.s32 %s23, 1
    %s25 = scalar_select %p22, %s23, %s24
    %p28 = pneg %p22
    %p29 = scmp.eq.s32.totalorder %s13, 1
    %p30 = por %p28, %p29
    %p31 = scmp.ne.s32.totalorder %s23, %s26
    %p32 = scmp.eq.s32.totalorder %s13, 0
    %p33 = por %p31, %p32
    %p34 = scmp.ne.s32.totalorder %s23, %s26
    %p35 = scmp.eq.s32.totalorder %s18, 1
    %p36 = por %p34, %p35
    %p37 = scmp.ne.s32.totalorder %s26, %s27
    %p38 = scmp.eq.s32.totalorder %s18, 0
    %p39 = por %p37, %p38
    %p40 = scmp.ne.s32.totalorder %s26, %s27
    %p41 = scmp.eq.s32.totalorder %s19, 1
    %p42 = por %p40, %p41
    %p44 = scmp.ne.s32.totalorder %s27, %s43
    %p45 = scmp.eq.s32.totalorder %s19, 0
    %p46 = por %p44, %p45
    %s48 = sadd.s32 %s47, 1
    %p51 = scmp.eq.s32.totalorder %s13, 1
    %p52 = scmp.ne.s32.totalorder %s47, %s49
    %p53 = scmp.eq.s32.totalorder %s13, 0
    %p54 = por %p52, %p53
    %p55 = scmp.ne.s32.totalorder %s47, %s49
    %p56 = scmp.eq.s32.totalorder %s18, 1
    %p57 = por %p55, %p56
    %p58 = scmp.ne.s32.totalorder %s49, %s50
    %p59 = scmp.eq.s32.totalorder %s18, 0
    %p60 = por %p58, %p59
    %p61 = scmp.ne.s32.totalorder %s49, %s50
    %p62 = scmp.eq.s32.totalorder %s19, 1
    %p63 = por %p61, %p62
    %p65 = scmp.ne.s32.totalorder %s50, %s64
    %p66 = scmp.eq.s32.totalorder %s19, 0
    %p67 = por %p65, %p66
    %s69 = sadd.s32 %s68, 1
    %p72 = scmp.eq.s32.totalorder %s13, 1
    %p73 = scmp.ne.s32.totalorder %s68, %s70
    %p74 = scmp.eq.s32.totalorder %s13, 0
    %p75 = por %p73, %p74
    %p76 = scmp.ne.s32.totalorder %s68, %s70
    %p77 = scmp.eq.s32.totalorder %s18, 1
    %p78 = por %p76, %p77
    %p79 = scmp.ne.s32.totalorder %s70, %s71
    %p80 = scmp.eq.s32.totalorder %s18, 0
    %p81 = por %p79, %p80
    %p82 = scmp.ne.s32.totalorder %s70, %s71
    %p83 = scmp.eq.s32.totalorder %s19, 1
    %p84 = por %p82, %p83
    %p86 = scmp.ne.s32.totalorder %s71, %s85
    %p87 = scmp.eq.s32.totalorder %s19, 0
    %p88 = por %p86, %p87
    %s90 = sadd.s32 %s89, 1
    %p93 = scmp.eq.s32.totalorder %s13, 1
    %p94 = scmp.ne.s32.totalorder %s89, %s91
    %p95 = scmp.eq.s32.totalorder %s13, 0
    %p96 = por %p94, %p95
    %p97 = scmp.ne.s32.totalorder %s89, %s91
    %p98 = scmp.eq.s32.totalorder %s18, 1
    %p99 = por %p97, %p98
    %p100 = scmp.ne.s32.totalorder %s91, %s92
    %p101 = scmp.eq.s32.totalorder %s18, 0
    %p102 = por %p100, %p101
    %p103 = scmp.ne.s32.totalorder %s91, %s92
    %p104 = scmp.eq.s32.totalorder %s19, 1
    %p105 = por %p103, %p104
    %p107 = scmp.ne.s32.totalorder %s92, %s106
    %p108 = scmp.eq.s32.totalorder %s19, 0
    %p109 = por %p107, %p108
    %s111 = sadd.s32 %s110, 1
    %p114 = scmp.eq.s32.totalorder %s13, 1
    %p115 = scmp.ne.s32.totalorder %s110, %s112
    %p116 = scmp.eq.s32.totalorder %s13, 0
    %p117 = por %p115, %p116
    %p118 = scmp.ne.s32.totalorder %s110, %s112
    %p119 = scmp.eq.s32.totalorder %s18, 1
    %p120 = por %p118, %p119
    %p121 = scmp.ne.s32.totalorder %s112, %s113
    %p122 = scmp.eq.s32.totalorder %s18, 0
    %p123 = por %p121, %p122
    %p124 = scmp.ne.s32.totalorder %s112, %s113
    %p125 = scmp.eq.s32.totalorder %s19, 1
    %p126 = por %p124, %p125
    %p128 = scmp.ne.s32.totalorder %s113, %s127
    %p129 = scmp.eq.s32.totalorder %s19, 0
    %p130 = por %p128, %p129
    %s132 = sadd.s32 %s131, 1
    %p135 = scmp.eq.s32.totalorder %s13, 1
    %p136 = scmp.ne.s32.totalorder %s131, %s133
    %p137 = scmp.eq.s32.totalorder %s13, 0
    %p138 = por %p136, %p137
    %p139 = scmp.ne.s32.totalorder %s131, %s133
    %p140 = scmp.eq.s32.totalorder %s18, 1
    %p141 = por %p139, %p140
    %p142 = scmp.ne.s32.totalorder %s133, %s134
    %p143 = scmp.eq.s32.totalorder %s18, 0
    %p144 = por %p142, %p143
    %p145 = scmp.ne.s32.totalorder %s133, %s134
    %p146 = scmp.eq.s32.totalorder %s19, 1
    %p147 = por %p145, %p146
    %p149 = scmp.ne.s32.totalorder %s134, %s148
    %p150 = scmp.eq.s32.totalorder %s19, 0
    %p151 = por %p149, %p150
    %s153 = sadd.s32 %s152, 1
    %p156 = scmp.eq.s32.totalorder %s13, 1
    %p157 = scmp.ne.s32.totalorder %s152, %s154
    %p158 = scmp.eq.s32.totalorder %s13, 0
    %p159 = por %p157, %p158
    %p160 = scmp.ne.s32.totalorder %s152, %s154
    %p161 = scmp.eq.s32.totalorder %s18, 1
    %p162 = por %p160, %p161
    %p163 = scmp.ne.s32.totalorder %s154, %s155
    %p164 = scmp.eq.s32.totalorder %s18, 0
    %p165 = por %p163, %p164
    %p166 = scmp.ne.s32.totalorder %s154, %s155
    %p167 = scmp.eq.s32.totalorder %s19, 1
    %p168 = por %p166, %p167
    %p170 = scmp.ne.s32.totalorder %s155, %s169
    %p171 = scmp.eq.s32.totalorder %s19, 0
    %p172 = por %p170, %p171
    %s173 = ssub.s32 %s13, %s20
    %p174 = scmp.eq.s32.totalorder %s173, 0
    %s176 = sadd.s32 %s175, 1
    %s177 = scalar_select %p174, %s175, %s176
    %p180 = pneg %p174
    %p181 = scmp.eq.s32.totalorder %s13, 1
    %p182 = por %p180, %p181
    %p183 = scmp.ne.s32.totalorder %s175, %s178
    %p184 = scmp.eq.s32.totalorder %s13, 0
    %p185 = por %p183, %p184
    %p186 = scmp.ne.s32.totalorder %s175, %s178
    %p187 = scmp.eq.s32.totalorder %s18, 1
    %p188 = por %p186, %p187
    %p189 = scmp.ne.s32.totalorder %s178, %s179
    %p190 = scmp.eq.s32.totalorder %s18, 0
    %p191 = por %p189, %p190
    %p192 = scmp.ne.s32.totalorder %s178, %s179
    %p193 = scmp.eq.s32.totalorder %s19, 1
    %p194 = por %p192, %p193
    %p196 = scmp.ne.s32.totalorder %s179, %s195
    %p197 = scmp.eq.s32.totalorder %s19, 0
    %p198 = por %p196, %p197
    %p199 = scmp.le.s32.totalorder 1, %s13
    %p200 = scmp.lt.s32.totalorder %s13, 3
    %p201 = pnand %p199, %p200
    %p202 = pneg %p201
    // Predicated region
    $region9: #{fcu_down3d.1} parent=5 // pred_check
      _
    $region10: #{fcu_down3d.1} parent=5 // pred_check_branch
      %204 = sbr.rel (%p201) target = $region12
    $region11: #{fcu_down3d.1} parent=5 // pred_region
      %s205 = ssub.s32 %s13, 1
      // Predicated region
      $region13: #{fcu_down3d.1} parent=11 // pred_check
        %p206 = pneg %p60
      $region14: #{fcu_down3d.1} parent=11 // pred_check_branch
        %208 = sbr.rel (%p206) target = $region16
      $region15: #{fcu_down3d.1} parent=11 // pred_region
        _
      $region16: #{fcu_down3d.1} parent=11 // pred_fallthru
        _
      // Predicated region
      $region17: #{fcu_down3d.1} parent=11 // pred_check
        %p209 = pneg %p81
      $region18: #{fcu_down3d.1} parent=11 // pred_check_branch
        %211 = sbr.rel (%p209) target = $region20
      $region19: #{fcu_down3d.1} parent=11 // pred_region
        _
      $region20: #{fcu_down3d.1} parent=11 // pred_fallthru
        _
      // Predicated region
      $region21: #{fcu_down3d.1} parent=11 // pred_check
        %p212 = pneg %p102
      $region22: #{fcu_down3d.1} parent=11 // pred_check_branch
        %214 = sbr.rel (%p212) target = $region24
      $region23: #{fcu_down3d.1} parent=11 // pred_region
        _
      $region24: #{fcu_down3d.1} parent=11 // pred_fallthru
        _
      // Predicated region
      $region25: #{fcu_down3d.1} parent=11 // pred_check
        %p215 = pneg %p123
      $region26: #{fcu_down3d.1} parent=11 // pred_check_branch
        %217 = sbr.rel (%p215) target = $region28
      $region27: #{fcu_down3d.1} parent=11 // pred_region
        _
      $region28: #{fcu_down3d.1} parent=11 // pred_fallthru
        _
      // Predicated region
      $region29: #{fcu_down3d.1} parent=11 // pred_check
        %p218 = pneg %p144
      $region30: #{fcu_down3d.1} parent=11 // pred_check_branch
        %220 = sbr.rel (%p218) target = $region32
      $region31: #{fcu_down3d.1} parent=11 // pred_region
        _
      $region32: #{fcu_down3d.1} parent=11 // pred_fallthru
        _
      // Predicated region
      $region33: #{fcu_down3d.1} parent=11 // pred_check
        %p221 = pneg %p165
      $region34: #{fcu_down3d.1} parent=11 // pred_check_branch
        %223 = sbr.rel (%p221) target = $region36
      $region35: #{fcu_down3d.1} parent=11 // pred_region
        _
      $region36: #{fcu_down3d.1} parent=11 // pred_fallthru
        _
    $region12: #{fcu_down3d.1} parent=5 // pred_fallthru
      _
    %p224 = scmp.lt.s32.totalorder %s13, 2
    // Predicated region
    $region37: #{fcu_down3d.1} parent=5 // pred_check
      %p225 = pneg %p224
    $region38: #{fcu_down3d.1} parent=5 // pred_check_branch
      %227 = sbr.rel (%p225) target = $region40
    $region39: #{fcu_down3d.1} parent=5 // pred_region
      // Predicated region
      $region41: #{fcu_down3d.1} parent=39 // pred_check
        %p228 = pneg %p33
      $region42: #{fcu_down3d.1} parent=39 // pred_check_branch
        %230 = sbr.rel (%p228) target = $region44
      $region43: #{fcu_down3d.1} parent=39 // pred_region
        %s231 = smul.u32 16, %s13
        %p232 = scmp.lt.s32.totalorder %s231, 31
        %s233 = scalar_select %p232, %s231, 31
        %s234 = smul.addr %s233, 8
        %s235 = scalar_lea.vmem %s0, %s234
        %s236 = smul.u32 16, %s13
      $region44: #{fcu_down3d.1} parent=39 // pred_fallthru
        _
    $region40: #{fcu_down3d.1} parent=5 // pred_fallthru
      _
    %p237 = scmp.le.s32.totalorder 1, %s13
    %p238 = scmp.lt.s32.totalorder %s13, 3
    %p239 = pnand %p237, %p238
    %p240 = pneg %p239
    // Predicated region
    $region45: #{fcu_down3d.1} parent=5 // pred_check
      _
    $region46: #{fcu_down3d.1} parent=5 // pred_check_branch
      %242 = sbr.rel (%p239) target = $region48
    $region47: #{fcu_down3d.1} parent=5 // pred_region
      %s243 = ssub.s32 %s13, 1
      %s244 = smul.u32 16, %s18
      %p245 = scmp.lt.s32.totalorder %s244, 31
      %s246 = scalar_select %p245, %s244, 31
      %s247 = smul.addr %s246, 8
      %s248 = scalar_lea.vmem %s0, %s247
      %p249 = pneg %p39
      %p250 = pneg %p36
      %p251 = pneg %p60
      %p252 = pneg %p57
      %p253 = pneg %p81
      %p254 = pneg %p78
      %p255 = pneg %p102
      %p256 = pneg %p99
      %p257 = pneg %p123
      %p258 = pneg %p120
      %p259 = pneg %p144
      %p260 = pneg %p141
      %p261 = pneg %p165
      %p262 = pneg %p162
      %p263 = pneg %p191
      %p264 = pneg %p188
      %s265 = smul.u32 16, %s18
      %p266 = scmp.lt.s32.totalorder %s265, 31
      %s267 = scalar_select %p266, %s265, 31
      %s268 = smul.addr %s267, 8
      %s269 = scalar_lea.vmem %s7, %s268
      %s270 = smul.u32 16, %s18
      %p271 = scmp.lt.s32.totalorder %s270, 31
      %s272 = scalar_select %p271, %s270, 31
      %s273 = smul.addr %s272, 8
      %s274 = scalar_lea.vmem %s0, %s273
      %s275 = smul.u32 16, %s18
      %s276 = smul.u32 16, %s18
      %p277 = scmp.lt.s32.totalorder %s276, 31
      %s278 = scalar_select %p277, %s276, 31
      %s279 = smul.addr %s278, 8
      %s280 = scalar_lea.vmem %s7, %s279
      %s281 = smul.u32 16, %s18
      %v282 = vld [vmem:[%s274] sm:$0xff]
      %v283 = vld [vmem:[%s274 + $0x8] sm:$0xff]
      %v284 = vld [vmem:[%s274 + $0x10] sm:$0xff]
      %v285 = vld [vmem:[%s274 + $0x18] sm:$0xff]
      %v286 = vld [vmem:[%s274 + $0x20] sm:$0xff]
      %v287 = vld [vmem:[%s274 + $0x28] sm:$0xff]
      %v288 = vld [vmem:[%s274 + $0x30] sm:$0xff]
      %v289 = vld [vmem:[%s274 + $0x38] sm:$0xff]
      %v290 = vld [vmem:[%s274 + $0x40] sm:$0xff]
      %v291 = vld [vmem:[%s274 + $0x48] sm:$0xff]
      %v292 = vld [vmem:[%s274 + $0x50] sm:$0xff]
      %v293 = vld [vmem:[%s274 + $0x58] sm:$0xff]
      %v294 = vld [vmem:[%s274 + $0x60] sm:$0xff]
      %v295 = vld [vmem:[%s274 + $0x68] sm:$0xff]
      %v296 = vld [vmem:[%s274 + $0x70] sm:$0xff]
      %v297 = vld [vmem:[%s274 + $0x78] sm:$0xff]
      %v298 = vld [vmem:[%s1] sm:$0xff]
      %v299 = vld [vmem:[%s1 + $0x8] sm:$0xff]
      %v300 = vld [vmem:[%s2] sm:$0x1]
      %v302 = vlaneseq
      %v303 = vshrl.u32 %v302, 7
      %v304 = vsub.s32 0, %v303
      %v305 = vrot.slane %v300, %v304
      %vm307 = vcmask 130048
      %v309 = vsel %vm307, %v282, 0
      %v312 = vsel %vm307, %v283, 0
      %v315 = vsel %vm307, %v284, 0
      %v318 = vsel %vm307, %v285, 0
      %v321 = vsel %vm307, %v286, 0
      %v324 = vsel %vm307, %v287, 0
      %v327 = vsel %vm307, %v288, 0
      %v330 = vsel %vm307, %v289, 0
      %v333 = vsel %vm307, %v290, 0
      %v336 = vsel %vm307, %v291, 0
      %v339 = vsel %vm307, %v292, 0
      %v342 = vsel %vm307, %v293, 0
      %v345 = vsel %vm307, %v294, 0
      %v348 = vsel %vm307, %v295, 0
      %v351 = vsel %vm307, %v296, 0
      %v354 = vsel %vm307, %v297, 0
      %356 = vmatprep.subr.mxu0 0.0
      %357 = vmatpush1.msra.mxu0 0.0
      %358 = vmatprep.subr.mxu0 0.0
      %359 = vmatpush1.msra.mxu0 0.0
      %360 = vmatprep.subr.mxu0 0.0
      %361 = vmatpush1.msra.mxu0 0.0
      %362 = vmatprep.subr.mxu0 0.0
      %363 = vmatpush1.msra.mxu0 0.0
      %364 = vmatprep.subr.mxu0 0.0
      %365 = vmatpush1.msra.mxu0 0.0
      %366 = vmatprep.subr.mxu0 0.0
      %367 = vmatpush1.msra.mxu0 0.0
      %368 = vmatprep.subr.mxu0 0.0
      %369 = vmatpush1.msra.mxu0 0.0
      %370 = vmatprep.subr.mxu0 0.0
      %371 = vmatpush1.msra.mxu0 0.0
      %372 = vmatprep.subr.mxu0 0.0
      %373 = vmatpush1.msra.mxu0 0.0
      %374 = vmatprep.subr.mxu0 0.0
      %375 = vmatpush1.msra.mxu0 0.0
      %376 = vmatprep.subr.mxu0 0.0
      %377 = vmatpush1.msra.mxu0 0.0
      %378 = vmatprep.subr.mxu0 0.0
      %379 = vmatpush1.msra.mxu0 0.0
      %380 = vmatprep.subr.mxu0 0.0
      %381 = vmatpush1.msra.mxu0 0.0
      %382 = vmatprep.subr.mxu0 0.0
      %383 = vmatpush1.msra.mxu0 0.0
      %384 = vmatprep.subr.mxu0 0.0
      %385 = vmatpush1.msra.mxu0 %v299
      %386 = vmatprep.subr.mxu0 0.0
      %387 = vmatpush1.msra.mxu0 %v298
      %388 = vmatprep.subr.mxu0 0.0
      %389 = vmatpush2.msra.mxu0 0.0
      %390 = vmatprep.subr.mxu0 0.0
      %391 = vmatpush2.msra.mxu0 0.0
      %392 = vmatprep.subr.mxu0 0.0
      %393 = vmatpush2.msra.mxu0 0.0
      %394 = vmatprep.subr.mxu0 0.0
      %395 = vmatpush2.msra.mxu0 0.0
      %396 = vmatprep.subr.mxu0 0.0
      %397 = vmatpush2.msra.mxu0 0.0
      %398 = vmatprep.subr.mxu0 0.0
      %399 = vmatpush2.msra.mxu0 0.0
      %400 = vmatprep.subr.mxu0 0.0
      %401 = vmatpush2.msra.mxu0 0.0
      %402 = vmatprep.subr.mxu0 0.0
      %403 = vmatpush2.msra.mxu0 0.0
      %404 = vmatprep.subr.mxu0 0.0
      %405 = vmatpush2.msra.mxu0 0.0
      %406 = vmatprep.subr.mxu0 0.0
      %407 = vmatpush2.msra.mxu0 0.0
      %408 = vmatprep.subr.mxu0 0.0
      %409 = vmatpush2.msra.mxu0 0.0
      %410 = vmatprep.subr.mxu0 0.0
      %411 = vmatpush2.msra.mxu0 0.0
      %412 = vmatprep.subr.mxu0 0.0
      %413 = vmatpush2.msra.mxu0 0.0
      %414 = vmatprep.subr.mxu0 0.0
      %415 = vmatpush2.msra.mxu0 0.0
      %416 = vmatprep.subr.mxu0 0.0
      %417 = vmatpush2.msra.mxu0 0.0
      %418 = vmatprep.subr.mxu0 0.0
      %419 = vmatpush2.msra.mxu0 0.0
      %420 = vmatprep.mubr.f32.mxu0 0.0
      %421 = vmatmul.mubr.f32.gmra.mxu0 %v309
      %v422 = vpop.f32.mrf.mxu0
      %v423 = vadd.f32 %v305, %v422
      %v424 = vpop.f32.mrf.mxu0
      %425 = vmatprep.mubr.f32.mxu0 0.0
      %426 = vmatmul.mubr.f32.gmra.mxu0 %v312
      %v427 = vpop.f32.mrf.mxu0
      %v428 = vadd.f32 %v305, %v427
      %v429 = vpop.f32.mrf.mxu0
      %430 = vmatprep.mubr.f32.mxu0 0.0
      %431 = vmatmul.mubr.f32.gmra.mxu0 %v315
      %v432 = vpop.f32.mrf.mxu0
      %v433 = vadd.f32 %v305, %v432
      %v434 = vpop.f32.mrf.mxu0
      %435 = vmatprep.mubr.f32.mxu0 0.0
      %436 = vmatmul.mubr.f32.gmra.mxu0 %v318
      %v437 = vpop.f32.mrf.mxu0
      %v438 = vadd.f32 %v305, %v437
      %v439 = vpop.f32.mrf.mxu0
      %440 = vmatprep.mubr.f32.mxu0 0.0
      %441 = vmatmul.mubr.f32.gmra.mxu0 %v321
      %v442 = vpop.f32.mrf.mxu0
      %v443 = vadd.f32 %v305, %v442
      %v444 = vpop.f32.mrf.mxu0
      %445 = vmatprep.mubr.f32.mxu0 0.0
      %446 = vmatmul.mubr.f32.gmra.mxu0 %v324
      %v447 = vpop.f32.mrf.mxu0
      %v448 = vadd.f32 %v305, %v447
      %v449 = vpop.f32.mrf.mxu0
      %450 = vmatprep.mubr.f32.mxu0 0.0
      %451 = vmatmul.mubr.f32.gmra.mxu0 %v327
      %v452 = vpop.f32.mrf.mxu0
      %v453 = vadd.f32 %v305, %v452
      %v454 = vpop.f32.mrf.mxu0
      %455 = vmatprep.mubr.f32.mxu0 0.0
      %456 = vmatmul.mubr.f32.gmra.mxu0 %v330
      %v457 = vpop.f32.mrf.mxu0
      %v458 = vadd.f32 %v305, %v457
      %v459 = vpop.f32.mrf.mxu0
      %460 = vmatprep.mubr.f32.mxu0 0.0
      %461 = vmatmul.mubr.f32.gmra.mxu0 %v333
      %v462 = vpop.f32.mrf.mxu0
      %v463 = vadd.f32 %v305, %v462
      %v464 = vpop.f32.mrf.mxu0
      %465 = vmatprep.mubr.f32.mxu0 0.0
      %466 = vmatmul.mubr.f32.gmra.mxu0 %v336
      %v467 = vpop.f32.mrf.mxu0
      %v468 = vadd.f32 %v305, %v467
      %v469 = vpop.f32.mrf.mxu0
      %470 = vmatprep.mubr.f32.mxu0 0.0
      %471 = vmatmul.mubr.f32.gmra.mxu0 %v339
      %v472 = vpop.f32.mrf.mxu0
      %v473 = vadd.f32 %v305, %v472
      %v474 = vpop.f32.mrf.mxu0
      %475 = vmatprep.mubr.f32.mxu0 0.0
      %476 = vmatmul.mubr.f32.gmra.mxu0 %v342
      %v477 = vpop.f32.mrf.mxu0
      %v478 = vadd.f32 %v305, %v477
      %v479 = vpop.f32.mrf.mxu0
      %480 = vmatprep.mubr.f32.mxu0 0.0
      %481 = vmatmul.mubr.f32.gmra.mxu0 %v345
      %v482 = vpop.f32.mrf.mxu0
      %v483 = vadd.f32 %v305, %v482
      %v484 = vpop.f32.mrf.mxu0
      %485 = vmatprep.mubr.f32.mxu0 0.0
      %486 = vmatmul.mubr.f32.gmra.mxu0 %v348
      %v487 = vpop.f32.mrf.mxu0
      %v488 = vadd.f32 %v305, %v487
      %v489 = vpop.f32.mrf.mxu0
      %490 = vmatprep.mubr.f32.mxu0 0.0
      %491 = vmatmul.mubr.f32.gmra.mxu0 %v351
      %v492 = vpop.f32.mrf.mxu0
      %v493 = vadd.f32 %v305, %v492
      %v494 = vpop.f32.mrf.mxu0
      %495 = vmatprep.mubr.f32.mxu0 0.0
      %496 = vmatmul.mubr.f32.gmra.mxu0 %v354
      %v497 = vpop.f32.mrf.mxu0
      %v498 = vadd.f32 %v305, %v497
      %v499 = vpop.f32.mrf.mxu0
      %500 = vdwg.mxu0
      %v501 = vld [vmem:[%s5] sm:$0xff]
      %v502 = vld [vmem:[%s5 + $0x8] sm:$0xff]
      %v503 = vld [vmem:[%s5 + $0x10] sm:$0xff]
      %v504 = vld [vmem:[%s5 + $0x18] sm:$0xff]
      %v505 = vld [vmem:[%s5 + $0x20] sm:$0xff]
      %v506 = vld [vmem:[%s5 + $0x28] sm:$0xff]
      %v507 = vld [vmem:[%s5 + $0x30] sm:$0xff]
      %v508 = vld [vmem:[%s5 + $0x38] sm:$0xff]
      %v509 = vld [vmem:[%s5 + $0x40] sm:$0xff]
      %v510 = vld [vmem:[%s5 + $0x48] sm:$0xff]
      %v511 = vld [vmem:[%s5 + $0x50] sm:$0xff]
      %v512 = vld [vmem:[%s5 + $0x58] sm:$0xff]
      %v513 = vld [vmem:[%s5 + $0x60] sm:$0xff]
      %v514 = vld [vmem:[%s5 + $0x68] sm:$0xff]
      %v515 = vld [vmem:[%s5 + $0x70] sm:$0xff]
      %v516 = vld [vmem:[%s5 + $0x78] sm:$0xff]
      %517 = vmatprep.subr.mxu0 0.0
      %518 = vmatpush1.msra.mxu0 %v516
      %519 = vmatprep.subr.mxu0 0.0
      %520 = vmatpush1.msra.mxu0 %v515
      %521 = vmatprep.subr.mxu0 0.0
      %522 = vmatpush1.msra.mxu0 %v514
      %523 = vmatprep.subr.mxu0 0.0
      %524 = vmatpush1.msra.mxu0 %v513
      %525 = vmatprep.subr.mxu0 0.0
      %526 = vmatpush1.msra.mxu0 %v512
      %527 = vmatprep.subr.mxu0 0.0
      %528 = vmatpush1.msra.mxu0 %v511
      %529 = vmatprep.subr.mxu0 0.0
      %530 = vmatpush1.msra.mxu0 %v510
      %531 = vmatprep.subr.mxu0 0.0
      %532 = vmatpush1.msra.mxu0 %v509
      %533 = vmatprep.subr.mxu0 0.0
      %534 = vmatpush1.msra.mxu0 %v508
      %535 = vmatprep.subr.mxu0 0.0
      %536 = vmatpush1.msra.mxu0 %v507
      %537 = vmatprep.subr.mxu0 0.0
      %538 = vmatpush1.msra.mxu0 %v506
      %539 = vmatprep.subr.mxu0 0.0
      %540 = vmatpush1.msra.mxu0 %v505
      %541 = vmatprep.subr.mxu0 0.0
      %542 = vmatpush1.msra.mxu0 %v504
      %543 = vmatprep.subr.mxu0 0.0
      %544 = vmatpush1.msra.mxu0 %v503
      %545 = vmatprep.subr.mxu0 0.0
      %546 = vmatpush1.msra.mxu0 %v502
      %547 = vmatprep.subr.mxu0 0.0
      %548 = vmatpush1.msra.mxu0 %v501
      %549 = vmatprep.subr.mxu0 0.0
      %550 = vmatpush2.msra.mxu0 0.0
      %551 = vmatprep.subr.mxu0 0.0
      %552 = vmatpush2.msra.mxu0 0.0
      %553 = vmatprep.subr.mxu0 0.0
      %554 = vmatpush2.msra.mxu0 0.0
      %555 = vmatprep.subr.mxu0 0.0
      %556 = vmatpush2.msra.mxu0 0.0
      %557 = vmatprep.subr.mxu0 0.0
      %558 = vmatpush2.msra.mxu0 0.0
      %559 = vmatprep.subr.mxu0 0.0
      %560 = vmatpush2.msra.mxu0 0.0
      %561 = vmatprep.subr.mxu0 0.0
      %562 = vmatpush2.msra.mxu0 0.0
      %563 = vmatprep.subr.mxu0 0.0
      %564 = vmatpush2.msra.mxu0 0.0
      %565 = vmatprep.subr.mxu0 0.0
      %566 = vmatpush2.msra.mxu0 0.0
      %567 = vmatprep.subr.mxu0 0.0
      %568 = vmatpush2.msra.mxu0 0.0
      %569 = vmatprep.subr.mxu0 0.0
      %570 = vmatpush2.msra.mxu0 0.0
      %571 = vmatprep.subr.mxu0 0.0
      %572 = vmatpush2.msra.mxu0 0.0
      %573 = vmatprep.subr.mxu0 0.0
      %574 = vmatpush2.msra.mxu0 0.0
      %575 = vmatprep.subr.mxu0 0.0
      %576 = vmatpush2.msra.mxu0 0.0
      %577 = vmatprep.subr.mxu0 0.0
      %578 = vmatpush2.msra.mxu0 0.0
      %579 = vmatprep.subr.mxu0 0.0
      %580 = vmatpush2.msra.mxu0 0.0
      %581 = vmatprep.mubr.f32.mxu0 0.0
      %582 = vmatmul.mubr.f32.gmra.mxu0 %v423
      %v583 = vpop.f32.mrf.mxu0
      %v584 = vadd.f32 0.0, %v583
      %v585 = vpop.f32.mrf.mxu0
      %586 = vmatprep.mubr.f32.mxu0 0.0
      %587 = vmatmul.mubr.f32.gmra.mxu0 %v428
      %v588 = vpop.f32.mrf.mxu0
      %v589 = vadd.f32 0.0, %v588
      %v590 = vpop.f32.mrf.mxu0
      %591 = vmatprep.mubr.f32.mxu0 0.0
      %592 = vmatmul.mubr.f32.gmra.mxu0 %v433
      %v593 = vpop.f32.mrf.mxu0
      %v594 = vadd.f32 0.0, %v593
      %v595 = vpop.f32.mrf.mxu0
      %596 = vmatprep.mubr.f32.mxu0 0.0
      %597 = vmatmul.mubr.f32.gmra.mxu0 %v438
      %v598 = vpop.f32.mrf.mxu0
      %v599 = vadd.f32 0.0, %v598
      %v600 = vpop.f32.mrf.mxu0
      %601 = vmatprep.mubr.f32.mxu0 0.0
      %602 = vmatmul.mubr.f32.gmra.mxu0 %v443
      %v603 = vpop.f32.mrf.mxu0
      %v604 = vadd.f32 0.0, %v603
      %v605 = vpop.f32.mrf.mxu0
      %606 = vmatprep.mubr.f32.mxu0 0.0
      %607 = vmatmul.mubr.f32.gmra.mxu0 %v448
      %v608 = vpop.f32.mrf.mxu0
      %v609 = vadd.f32 0.0, %v608
      %v610 = vpop.f32.mrf.mxu0
      %611 = vmatprep.mubr.f32.mxu0 0.0
      %612 = vmatmul.mubr.f32.gmra.mxu0 %v453
      %v613 = vpop.f32.mrf.mxu0
      %v614 = vadd.f32 0.0, %v613
      %v615 = vpop.f32.mrf.mxu0
      %616 = vmatprep.mubr.f32.mxu0 0.0
      %617 = vmatmul.mubr.f32.gmra.mxu0 %v458
      %v618 = vpop.f32.mrf.mxu0
      %v619 = vadd.f32 0.0, %v618
      %v620 = vpop.f32.mrf.mxu0
      %621 = vmatprep.mubr.f32.mxu0 0.0
      %622 = vmatmul.mubr.f32.gmra.mxu0 %v463
      %v623 = vpop.f32.mrf.mxu0
      %v624 = vadd.f32 0.0, %v623
      %v625 = vpop.f32.mrf.mxu0
      %626 = vmatprep.mubr.f32.mxu0 0.0
      %627 = vmatmul.mubr.f32.gmra.mxu0 %v468
      %v628 = vpop.f32.mrf.mxu0
      %v629 = vadd.f32 0.0, %v628
      %v630 = vpop.f32.mrf.mxu0
      %631 = vmatprep.mubr.f32.mxu0 0.0
      %632 = vmatmul.mubr.f32.gmra.mxu0 %v473
      %v633 = vpop.f32.mrf.mxu0
      %v634 = vadd.f32 0.0, %v633
      %v635 = vpop.f32.mrf.mxu0
      %636 = vmatprep.mubr.f32.mxu0 0.0
      %637 = vmatmul.mubr.f32.gmra.mxu0 %v478
      %v638 = vpop.f32.mrf.mxu0
      %v639 = vadd.f32 0.0, %v638
      %v640 = vpop.f32.mrf.mxu0
      %641 = vmatprep.mubr.f32.mxu0 0.0
      %642 = vmatmul.mubr.f32.gmra.mxu0 %v483
      %v643 = vpop.f32.mrf.mxu0
      %v644 = vadd.f32 0.0, %v643
      %v645 = vpop.f32.mrf.mxu0
      %646 = vmatprep.mubr.f32.mxu0 0.0
      %647 = vmatmul.mubr.f32.gmra.mxu0 %v488
      %v648 = vpop.f32.mrf.mxu0
      %v649 = vadd.f32 0.0, %v648
      %v650 = vpop.f32.mrf.mxu0
      %651 = vmatprep.mubr.f32.mxu0 0.0
      %652 = vmatmul.mubr.f32.gmra.mxu0 %v493
      %v653 = vpop.f32.mrf.mxu0
      %v654 = vadd.f32 0.0, %v653
      %v655 = vpop.f32.mrf.mxu0
      %656 = vmatprep.mubr.f32.mxu0 0.0
      %657 = vmatmul.mubr.f32.gmra.mxu0 %v498
      %v658 = vpop.f32.mrf.mxu0
      %v659 = vadd.f32 0.0, %v658
      %v660 = vpop.f32.mrf.mxu0
      %661 = vdwg.mxu0
      %v662 = vld [vmem:[%s6] sm:$0xf]
      %vm663 = vcmask 31744
      %v665 = vsel %vm663, %v584, 0
      %v668 = vsel %vm663, %v589, 0
      %v671 = vsel %vm663, %v594, 0
      %v674 = vsel %vm663, %v599, 0
      %v677 = vsel %vm663, %v604, 0
      %v680 = vsel %vm663, %v609, 0
      %v683 = vsel %vm663, %v614, 0
      %v686 = vsel %vm663, %v619, 0
      %v689 = vsel %vm663, %v624, 0
      %v692 = vsel %vm663, %v629, 0
      %v695 = vsel %vm663, %v634, 0
      %v698 = vsel %vm663, %v639, 0
      %v701 = vsel %vm663, %v644, 0
      %v704 = vsel %vm663, %v649, 0
      %v707 = vsel %vm663, %v654, 0
      %v710 = vsel %vm663, %v659, 0
      %vm712 = vcmask 1043456
      %v714 = vsel %vm712, %v662, 0
      %716 = vmatprep.subr.mxu0 0.0
      %717 = vmatpush1.msra.mxu0 0.0
      %718 = vmatprep.subr.mxu0 0.0
      %719 = vmatpush1.msra.mxu0 0.0
      %720 = vmatprep.subr.mxu0 0.0
      %721 = vmatpush1.msra.mxu0 0.0
      %722 = vmatprep.subr.mxu0 0.0
      %723 = vmatpush1.msra.mxu0 0.0
      %724 = vmatprep.subr.mxu0 0.0
      %725 = vmatpush1.msra.mxu0 0.0
      %726 = vmatprep.subr.mxu0 0.0
      %727 = vmatpush1.msra.mxu0 0.0
      %728 = vmatprep.subr.mxu0 0.0
      %729 = vmatpush1.msra.mxu0 0.0
      %730 = vmatprep.subr.mxu0 0.0
      %731 = vmatpush1.msra.mxu0 0.0
      %732 = vmatprep.subr.mxu0 0.0
      %733 = vmatpush1.msra.mxu0 0.0
      %734 = vmatprep.subr.mxu0 0.0
      %735 = vmatpush1.msra.mxu0 0.0
      %736 = vmatprep.subr.mxu0 0.0
      %737 = vmatpush1.msra.mxu0 0.0
      %738 = vmatprep.subr.mxu0 0.0
      %739 = vmatpush1.msra.mxu0 0.0
      %740 = vmatprep.subr.mxu0 0.0
      %741 = vmatpush1.msra.mxu0 0.0
      %742 = vmatprep.subr.mxu0 0.0
      %743 = vmatpush1.msra.mxu0 0.0
      %744 = vmatprep.subr.mxu0 0.0
      %745 = vmatpush1.msra.mxu0 0.0
      %746 = vmatprep.subr.mxu0 0.0
      %747 = vmatpush1.msra.mxu0 %v714
      %748 = vmatprep.subr.mxu0 0.0
      %749 = vmatpush2.msra.mxu0 0.0
      %750 = vmatprep.subr.mxu0 0.0
      %751 = vmatpush2.msra.mxu0 0.0
      %752 = vmatprep.subr.mxu0 0.0
      %753 = vmatpush2.msra.mxu0 0.0
      %754 = vmatprep.subr.mxu0 0.0
      %755 = vmatpush2.msra.mxu0 0.0
      %756 = vmatprep.subr.mxu0 0.0
      %757 = vmatpush2.msra.mxu0 0.0
      %758 = vmatprep.subr.mxu0 0.0
      %759 = vmatpush2.msra.mxu0 0.0
      %760 = vmatprep.subr.mxu0 0.0
      %761 = vmatpush2.msra.mxu0 0.0
      %762 = vmatprep.subr.mxu0 0.0
      %763 = vmatpush2.msra.mxu0 0.0
      %764 = vmatprep.subr.mxu0 0.0
      %765 = vmatpush2.msra.mxu0 0.0
      %766 = vmatprep.subr.mxu0 0.0
      %767 = vmatpush2.msra.mxu0 0.0
      %768 = vmatprep.subr.mxu0 0.0
      %769 = vmatpush2.msra.mxu0 0.0
      %770 = vmatprep.subr.mxu0 0.0
      %771 = vmatpush2.msra.mxu0 0.0
      %772 = vmatprep.subr.mxu0 0.0
      %773 = vmatpush2.msra.mxu0 0.0
      %774 = vmatprep.subr.mxu0 0.0
      %775 = vmatpush2.msra.mxu0 0.0
      %776 = vmatprep.subr.mxu0 0.0
      %777 = vmatpush2.msra.mxu0 0.0
      %778 = vmatprep.subr.mxu0 0.0
      %779 = vmatpush2.msra.mxu0 0.0
      %780 = vmatprep.mubr.f32.mxu0 0.0
      %781 = vmatmul.mubr.f32.gmra.mxu0 %v665
      %v782 = vpop.f32.mrf.mxu0
      %v783 = vadd.f32 0.0, %v782
      %v784 = vpop.f32.mrf.mxu0
      %785 = vmatprep.mubr.f32.mxu0 0.0
      %786 = vmatmul.mubr.f32.gmra.mxu0 %v668
      %v787 = vpop.f32.mrf.mxu0
      %v788 = vadd.f32 0.0, %v787
      %v789 = vpop.f32.mrf.mxu0
      %790 = vmatprep.mubr.f32.mxu0 0.0
      %791 = vmatmul.mubr.f32.gmra.mxu0 %v671
      %v792 = vpop.f32.mrf.mxu0
      %v793 = vadd.f32 0.0, %v792
      %v794 = vpop.f32.mrf.mxu0
      %795 = vmatprep.mubr.f32.mxu0 0.0
      %796 = vmatmul.mubr.f32.gmra.mxu0 %v674
      %v797 = vpop.f32.mrf.mxu0
      %v798 = vadd.f32 0.0, %v797
      %v799 = vpop.f32.mrf.mxu0
      %800 = vmatprep.mubr.f32.mxu0 0.0
      %801 = vmatmul.mubr.f32.gmra.mxu0 %v677
      %v802 = vpop.f32.mrf.mxu0
      %v803 = vadd.f32 0.0, %v802
      %v804 = vpop.f32.mrf.mxu0
      %805 = vmatprep.mubr.f32.mxu0 0.0
      %806 = vmatmul.mubr.f32.gmra.mxu0 %v680
      %v807 = vpop.f32.mrf.mxu0
      %v808 = vadd.f32 0.0, %v807
      %v809 = vpop.f32.mrf.mxu0
      %810 = vmatprep.mubr.f32.mxu0 0.0
      %811 = vmatmul.mubr.f32.gmra.mxu0 %v683
      %v812 = vpop.f32.mrf.mxu0
      %v813 = vadd.f32 0.0, %v812
      %v814 = vpop.f32.mrf.mxu0
      %815 = vmatprep.mubr.f32.mxu0 0.0
      %816 = vmatmul.mubr.f32.gmra.mxu0 %v686
      %v817 = vpop.f32.mrf.mxu0
      %v818 = vadd.f32 0.0, %v817
      %v819 = vpop.f32.mrf.mxu0
      %820 = vmatprep.mubr.f32.mxu0 0.0
      %821 = vmatmul.mubr.f32.gmra.mxu0 %v689
      %v822 = vpop.f32.mrf.mxu0
      %v823 = vadd.f32 0.0, %v822
      %v824 = vpop.f32.mrf.mxu0
      %825 = vmatprep.mubr.f32.mxu0 0.0
      %826 = vmatmul.mubr.f32.gmra.mxu0 %v692
      %v827 = vpop.f32.mrf.mxu0
      %v828 = vadd.f32 0.0, %v827
      %v829 = vpop.f32.mrf.mxu0
      %830 = vmatprep.mubr.f32.mxu0 0.0
      %831 = vmatmul.mubr.f32.gmra.mxu0 %v695
      %v832 = vpop.f32.mrf.mxu0
      %v833 = vadd.f32 0.0, %v832
      %v834 = vpop.f32.mrf.mxu0
      %835 = vmatprep.mubr.f32.mxu0 0.0
      %836 = vmatmul.mubr.f32.gmra.mxu0 %v698
      %v837 = vpop.f32.mrf.mxu0
      %v838 = vadd.f32 0.0, %v837
      %v839 = vpop.f32.mrf.mxu0
      %840 = vmatprep.mubr.f32.mxu0 0.0
      %841 = vmatmul.mubr.f32.gmra.mxu0 %v701
      %v842 = vpop.f32.mrf.mxu0
      %v843 = vadd.f32 0.0, %v842
      %v844 = vpop.f32.mrf.mxu0
      %845 = vmatprep.mubr.f32.mxu0 0.0
      %846 = vmatmul.mubr.f32.gmra.mxu0 %v704
      %v847 = vpop.f32.mrf.mxu0
      %v848 = vadd.f32 0.0, %v847
      %v849 = vpop.f32.mrf.mxu0
      %850 = vmatprep.mubr.f32.mxu0 0.0
      %851 = vmatmul.mubr.f32.gmra.mxu0 %v707
      %v852 = vpop.f32.mrf.mxu0
      %v853 = vadd.f32 0.0, %v852
      %v854 = vpop.f32.mrf.mxu0
      %855 = vmatprep.mubr.f32.mxu0 0.0
      %856 = vmatmul.mubr.f32.gmra.mxu0 %v710
      %v857 = vpop.f32.mrf.mxu0
      %v858 = vadd.f32 0.0, %v857
      %v859 = vpop.f32.mrf.mxu0
      %860 = vdwg.mxu0
      %v861 = vsub.f32 %v423, %v783
      %v862 = vsub.f32 %v428, %v788
      %v863 = vsub.f32 %v433, %v793
      %v864 = vsub.f32 %v438, %v798
      %v865 = vsub.f32 %v443, %v803
      %v866 = vsub.f32 %v448, %v808
      %v867 = vsub.f32 %v453, %v813
      %v868 = vsub.f32 %v458, %v818
      %v869 = vsub.f32 %v463, %v823
      %v870 = vsub.f32 %v468, %v828
      %v871 = vsub.f32 %v473, %v833
      %v872 = vsub.f32 %v478, %v838
      %v873 = vsub.f32 %v483, %v843
      %v874 = vsub.f32 %v488, %v848
      %v875 = vsub.f32 %v493, %v853
      %v876 = vsub.f32 %v498, %v858
      %v877 = vmul.f32 %v861, %v861
      %v878 = vmul.f32 %v862, %v862
      %v879 = vmul.f32 %v863, %v863
      %v880 = vmul.f32 %v864, %v864
      %v881 = vmul.f32 %v865, %v865
      %v882 = vmul.f32 %v866, %v866
      %v883 = vmul.f32 %v867, %v867
      %v884 = vmul.f32 %v868, %v868
      %v885 = vmul.f32 %v869, %v869
      %v886 = vmul.f32 %v870, %v870
      %v887 = vmul.f32 %v871, %v871
      %v888 = vmul.f32 %v872, %v872
      %v889 = vmul.f32 %v873, %v873
      %v890 = vmul.f32 %v874, %v874
      %v891 = vmul.f32 %v875, %v875
      %v892 = vmul.f32 %v876, %v876
      %893 = vmatprep.subr.mxu0 0.0
      %894 = vmatpush1.msra.mxu0 %v516
      %895 = vmatprep.subr.mxu0 0.0
      %896 = vmatpush1.msra.mxu0 %v515
      %897 = vmatprep.subr.mxu0 0.0
      %898 = vmatpush1.msra.mxu0 %v514
      %899 = vmatprep.subr.mxu0 0.0
      %900 = vmatpush1.msra.mxu0 %v513
      %901 = vmatprep.subr.mxu0 0.0
      %902 = vmatpush1.msra.mxu0 %v512
      %903 = vmatprep.subr.mxu0 0.0
      %904 = vmatpush1.msra.mxu0 %v511
      %905 = vmatprep.subr.mxu0 0.0
      %906 = vmatpush1.msra.mxu0 %v510
      %907 = vmatprep.subr.mxu0 0.0
      %908 = vmatpush1.msra.mxu0 %v509
      %909 = vmatprep.subr.mxu0 0.0
      %910 = vmatpush1.msra.mxu0 %v508
      %911 = vmatprep.subr.mxu0 0.0
      %912 = vmatpush1.msra.mxu0 %v507
      %913 = vmatprep.subr.mxu0 0.0
      %914 = vmatpush1.msra.mxu0 %v506
      %915 = vmatprep.subr.mxu0 0.0
      %916 = vmatpush1.msra.mxu0 %v505
      %917 = vmatprep.subr.mxu0 0.0
      %918 = vmatpush1.msra.mxu0 %v504
      %919 = vmatprep.subr.mxu0 0.0
      %920 = vmatpush1.msra.mxu0 %v503
      %921 = vmatprep.subr.mxu0 0.0
      %922 = vmatpush1.msra.mxu0 %v502
      %923 = vmatprep.subr.mxu0 0.0
      %924 = vmatpush1.msra.mxu0 %v501
      %925 = vmatprep.subr.mxu0 0.0
      %926 = vmatpush2.msra.mxu0 0.0
      %927 = vmatprep.subr.mxu0 0.0
      %928 = vmatpush2.msra.mxu0 0.0
      %929 = vmatprep.subr.mxu0 0.0
      %930 = vmatpush2.msra.mxu0 0.0
      %931 = vmatprep.subr.mxu0 0.0
      %932 = vmatpush2.msra.mxu0 0.0
      %933 = vmatprep.subr.mxu0 0.0
      %934 = vmatpush2.msra.mxu0 0.0
      %935 = vmatprep.subr.mxu0 0.0
      %936 = vmatpush2.msra.mxu0 0.0
      %937 = vmatprep.subr.mxu0 0.0
      %938 = vmatpush2.msra.mxu0 0.0
      %939 = vmatprep.subr.mxu0 0.0
      %940 = vmatpush2.msra.mxu0 0.0
      %941 = vmatprep.subr.mxu0 0.0
      %942 = vmatpush2.msra.mxu0 0.0
      %943 = vmatprep.subr.mxu0 0.0
      %944 = vmatpush2.msra.mxu0 0.0
      %945 = vmatprep.subr.mxu0 0.0
      %946 = vmatpush2.msra.mxu0 0.0
      %947 = vmatprep.subr.mxu0 0.0
      %948 = vmatpush2.msra.mxu0 0.0
      %949 = vmatprep.subr.mxu0 0.0
      %950 = vmatpush2.msra.mxu0 0.0
      %951 = vmatprep.subr.mxu0 0.0
      %952 = vmatpush2.msra.mxu0 0.0
      %953 = vmatprep.subr.mxu0 0.0
      %954 = vmatpush2.msra.mxu0 0.0
      %955 = vmatprep.subr.mxu0 0.0
      %956 = vmatpush2.msra.mxu0 0.0
      %957 = vmatprep.mubr.f32.mxu0 0.0
      %958 = vmatmul.mubr.f32.gmra.mxu0 %v877
      %v959 = vpop.f32.mrf.mxu0
      %v960 = vadd.f32 0.0, %v959
      %v961 = vpop.f32.mrf.mxu0
      %962 = vmatprep.mubr.f32.mxu0 0.0
      %963 = vmatmul.mubr.f32.gmra.mxu0 %v878
      %v964 = vpop.f32.mrf.mxu0
      %v965 = vadd.f32 0.0, %v964
      %v966 = vpop.f32.mrf.mxu0
      %967 = vmatprep.mubr.f32.mxu0 0.0
      %968 = vmatmul.mubr.f32.gmra.mxu0 %v879
      %v969 = vpop.f32.mrf.mxu0
      %v970 = vadd.f32 0.0, %v969
      %v971 = vpop.f32.mrf.mxu0
      %972 = vmatprep.mubr.f32.mxu0 0.0
      %973 = vmatmul.mubr.f32.gmra.mxu0 %v880
      %v974 = vpop.f32.mrf.mxu0
      %v975 = vadd.f32 0.0, %v974
      %v976 = vpop.f32.mrf.mxu0
      %977 = vmatprep.mubr.f32.mxu0 0.0
      %978 = vmatmul.mubr.f32.gmra.mxu0 %v881
      %v979 = vpop.f32.mrf.mxu0
      %v980 = vadd.f32 0.0, %v979
      %v981 = vpop.f32.mrf.mxu0
      %982 = vmatprep.mubr.f32.mxu0 0.0
      %983 = vmatmul.mubr.f32.gmra.mxu0 %v882
      %v984 = vpop.f32.mrf.mxu0
      %v985 = vadd.f32 0.0, %v984
      %v986 = vpop.f32.mrf.mxu0
      %987 = vmatprep.mubr.f32.mxu0 0.0
      %988 = vmatmul.mubr.f32.gmra.mxu0 %v883
      %v989 = vpop.f32.mrf.mxu0
      %v990 = vadd.f32 0.0, %v989
      %v991 = vpop.f32.mrf.mxu0
      %992 = vmatprep.mubr.f32.mxu0 0.0
      %993 = vmatmul.mubr.f32.gmra.mxu0 %v884
      %v994 = vpop.f32.mrf.mxu0
      %v995 = vadd.f32 0.0, %v994
      %v996 = vpop.f32.mrf.mxu0
      %997 = vmatprep.mubr.f32.mxu0 0.0
      %998 = vmatmul.mubr.f32.gmra.mxu0 %v885
      %v999 = vpop.f32.mrf.mxu0
      %v1000 = vadd.f32 0.0, %v999
      %v1001 = vpop.f32.mrf.mxu0
      %1002 = vmatprep.mubr.f32.mxu0 0.0
      %1003 = vmatmul.mubr.f32.gmra.mxu0 %v886
      %v1004 = vpop.f32.mrf.mxu0
      %v1005 = vadd.f32 0.0, %v1004
      %v1006 = vpop.f32.mrf.mxu0
      %1007 = vmatprep.mubr.f32.mxu0 0.0
      %1008 = vmatmul.mubr.f32.gmra.mxu0 %v887
      %v1009 = vpop.f32.mrf.mxu0
      %v1010 = vadd.f32 0.0, %v1009
      %v1011 = vpop.f32.mrf.mxu0
      %1012 = vmatprep.mubr.f32.mxu0 0.0
      %1013 = vmatmul.mubr.f32.gmra.mxu0 %v888
      %v1014 = vpop.f32.mrf.mxu0
      %v1015 = vadd.f32 0.0, %v1014
      %v1016 = vpop.f32.mrf.mxu0
      %1017 = vmatprep.mubr.f32.mxu0 0.0
      %1018 = vmatmul.mubr.f32.gmra.mxu0 %v889
      %v1019 = vpop.f32.mrf.mxu0
      %v1020 = vadd.f32 0.0, %v1019
      %v1021 = vpop.f32.mrf.mxu0
      %1022 = vmatprep.mubr.f32.mxu0 0.0
      %1023 = vmatmul.mubr.f32.gmra.mxu0 %v890
      %v1024 = vpop.f32.mrf.mxu0
      %v1025 = vadd.f32 0.0, %v1024
      %v1026 = vpop.f32.mrf.mxu0
      %1027 = vmatprep.mubr.f32.mxu0 0.0
      %1028 = vmatmul.mubr.f32.gmra.mxu0 %v891
      %v1029 = vpop.f32.mrf.mxu0
      %v1030 = vadd.f32 0.0, %v1029
      %v1031 = vpop.f32.mrf.mxu0
      %1032 = vmatprep.mubr.f32.mxu0 0.0
      %1033 = vmatmul.mubr.f32.gmra.mxu0 %v892
      %v1034 = vpop.f32.mrf.mxu0
      %v1035 = vadd.f32 0.0, %v1034
      %v1036 = vpop.f32.mrf.mxu0
      %1037 = vdwg.mxu0
      %v1039 = vsel %vm663, %v960, 0
      %v1042 = vsel %vm663, %v965, 0
      %v1045 = vsel %vm663, %v970, 0
      %v1048 = vsel %vm663, %v975, 0
      %v1051 = vsel %vm663, %v980, 0
      %v1054 = vsel %vm663, %v985, 0
      %v1057 = vsel %vm663, %v990, 0
      %v1060 = vsel %vm663, %v995, 0
      %v1063 = vsel %vm663, %v1000, 0
      %v1066 = vsel %vm663, %v1005, 0
      %v1069 = vsel %vm663, %v1010, 0
      %v1072 = vsel %vm663, %v1015, 0
      %v1075 = vsel %vm663, %v1020, 0
      %v1078 = vsel %vm663, %v1025, 0
      %v1081 = vsel %vm663, %v1030, 0
      %v1084 = vsel %vm663, %v1035, 0
      %1086 = vmatprep.subr.mxu0 0.0
      %1087 = vmatpush1.msra.mxu0 0.0
      %1088 = vmatprep.subr.mxu0 0.0
      %1089 = vmatpush1.msra.mxu0 0.0
      %1090 = vmatprep.subr.mxu0 0.0
      %1091 = vmatpush1.msra.mxu0 0.0
      %1092 = vmatprep.subr.mxu0 0.0
      %1093 = vmatpush1.msra.mxu0 0.0
      %1094 = vmatprep.subr.mxu0 0.0
      %1095 = vmatpush1.msra.mxu0 0.0
      %1096 = vmatprep.subr.mxu0 0.0
      %1097 = vmatpush1.msra.mxu0 0.0
      %1098 = vmatprep.subr.mxu0 0.0
      %1099 = vmatpush1.msra.mxu0 0.0
      %1100 = vmatprep.subr.mxu0 0.0
      %1101 = vmatpush1.msra.mxu0 0.0
      %1102 = vmatprep.subr.mxu0 0.0
      %1103 = vmatpush1.msra.mxu0 0.0
      %1104 = vmatprep.subr.mxu0 0.0
      %1105 = vmatpush1.msra.mxu0 0.0
      %1106 = vmatprep.subr.mxu0 0.0
      %1107 = vmatpush1.msra.mxu0 0.0
      %1108 = vmatprep.subr.mxu0 0.0
      %1109 = vmatpush1.msra.mxu0 0.0
      %1110 = vmatprep.subr.mxu0 0.0
      %1111 = vmatpush1.msra.mxu0 0.0
      %1112 = vmatprep.subr.mxu0 0.0
      %1113 = vmatpush1.msra.mxu0 0.0
      %1114 = vmatprep.subr.mxu0 0.0
      %1115 = vmatpush1.msra.mxu0 0.0
      %1116 = vmatprep.subr.mxu0 0.0
      %1117 = vmatpush1.msra.mxu0 %v714
      %1118 = vmatprep.subr.mxu0 0.0
      %1119 = vmatpush2.msra.mxu0 0.0
      %1120 = vmatprep.subr.mxu0 0.0
      %1121 = vmatpush2.msra.mxu0 0.0
      %1122 = vmatprep.subr.mxu0 0.0
      %1123 = vmatpush2.msra.mxu0 0.0
      %1124 = vmatprep.subr.mxu0 0.0
      %1125 = vmatpush2.msra.mxu0 0.0
      %1126 = vmatprep.subr.mxu0 0.0
      %1127 = vmatpush2.msra.mxu0 0.0
      %1128 = vmatprep.subr.mxu0 0.0
      %1129 = vmatpush2.msra.mxu0 0.0
      %1130 = vmatprep.subr.mxu0 0.0
      %1131 = vmatpush2.msra.mxu0 0.0
      %1132 = vmatprep.subr.mxu0 0.0
      %1133 = vmatpush2.msra.mxu0 0.0
      %1134 = vmatprep.subr.mxu0 0.0
      %1135 = vmatpush2.msra.mxu0 0.0
      %1136 = vmatprep.subr.mxu0 0.0
      %1137 = vmatpush2.msra.mxu0 0.0
      %1138 = vmatprep.subr.mxu0 0.0
      %1139 = vmatpush2.msra.mxu0 0.0
      %1140 = vmatprep.subr.mxu0 0.0
      %1141 = vmatpush2.msra.mxu0 0.0
      %1142 = vmatprep.subr.mxu0 0.0
      %1143 = vmatpush2.msra.mxu0 0.0
      %1144 = vmatprep.subr.mxu0 0.0
      %1145 = vmatpush2.msra.mxu0 0.0
      %1146 = vmatprep.subr.mxu0 0.0
      %1147 = vmatpush2.msra.mxu0 0.0
      %1148 = vmatprep.subr.mxu0 0.0
      %1149 = vmatpush2.msra.mxu0 0.0
      %1150 = vmatprep.mubr.f32.mxu0 0.0
      %1151 = vmatmul.mubr.f32.gmra.mxu0 %v1039
      %v1152 = vpop.f32.mrf.mxu0
      %v1153 = vadd.f32 1e-06, %v1152
      %v1154 = vpop.f32.mrf.mxu0
      %1155 = vmatprep.mubr.f32.mxu0 0.0
      %1156 = vmatmul.mubr.f32.gmra.mxu0 %v1042
      %v1157 = vpop.f32.mrf.mxu0
      %v1158 = vadd.f32 1e-06, %v1157
      %v1159 = vpop.f32.mrf.mxu0
      %1160 = vmatprep.mubr.f32.mxu0 0.0
      %1161 = vmatmul.mubr.f32.gmra.mxu0 %v1045
      %v1162 = vpop.f32.mrf.mxu0
      %v1163 = vadd.f32 1e-06, %v1162
      %v1164 = vpop.f32.mrf.mxu0
      %1165 = vmatprep.mubr.f32.mxu0 0.0
      %1166 = vmatmul.mubr.f32.gmra.mxu0 %v1048
      %v1167 = vpop.f32.mrf.mxu0
      %v1168 = vadd.f32 1e-06, %v1167
      %v1169 = vpop.f32.mrf.mxu0
      %1170 = vmatprep.mubr.f32.mxu0 0.0
      %1171 = vmatmul.mubr.f32.gmra.mxu0 %v1051
      %v1172 = vpop.f32.mrf.mxu0
      %v1173 = vadd.f32 1e-06, %v1172
      %v1174 = vpop.f32.mrf.mxu0
      %1175 = vmatprep.mubr.f32.mxu0 0.0
      %1176 = vmatmul.mubr.f32.gmra.mxu0 %v1054
      %v1177 = vpop.f32.mrf.mxu0
      %v1178 = vadd.f32 1e-06, %v1177
      %v1179 = vpop.f32.mrf.mxu0
      %1180 = vmatprep.mubr.f32.mxu0 0.0
      %1181 = vmatmul.mubr.f32.gmra.mxu0 %v1057
      %v1182 = vpop.f32.mrf.mxu0
      %v1183 = vadd.f32 1e-06, %v1182
      %v1184 = vpop.f32.mrf.mxu0
      %1185 = vmatprep.mubr.f32.mxu0 0.0
      %1186 = vmatmul.mubr.f32.gmra.mxu0 %v1060
      %v1187 = vpop.f32.mrf.mxu0
      %v1188 = vadd.f32 1e-06, %v1187
      %v1189 = vpop.f32.mrf.mxu0
      %1190 = vmatprep.mubr.f32.mxu0 0.0
      %1191 = vmatmul.mubr.f32.gmra.mxu0 %v1063
      %v1192 = vpop.f32.mrf.mxu0
      %v1193 = vadd.f32 1e-06, %v1192
      %v1194 = vpop.f32.mrf.mxu0
      %1195 = vmatprep.mubr.f32.mxu0 0.0
      %1196 = vmatmul.mubr.f32.gmra.mxu0 %v1066
      %v1197 = vpop.f32.mrf.mxu0
      %v1198 = vadd.f32 1e-06, %v1197
      %v1199 = vpop.f32.mrf.mxu0
      %1200 = vmatprep.mubr.f32.mxu0 0.0
      %1201 = vmatmul.mubr.f32.gmra.mxu0 %v1069
      %v1202 = vpop.f32.mrf.mxu0
      %v1203 = vadd.f32 1e-06, %v1202
      %v1204 = vpop.f32.mrf.mxu0
      %1205 = vmatprep.mubr.f32.mxu0 0.0
      %1206 = vmatmul.mubr.f32.gmra.mxu0 %v1072
      %v1207 = vpop.f32.mrf.mxu0
      %v1208 = vadd.f32 1e-06, %v1207
      %v1209 = vpop.f32.mrf.mxu0
      %1210 = vmatprep.mubr.f32.mxu0 0.0
      %1211 = vmatmul.mubr.f32.gmra.mxu0 %v1075
      %v1212 = vpop.f32.mrf.mxu0
      %v1213 = vadd.f32 1e-06, %v1212
      %v1214 = vpop.f32.mrf.mxu0
      %1215 = vmatprep.mubr.f32.mxu0 0.0
      %1216 = vmatmul.mubr.f32.gmra.mxu0 %v1078
      %v1217 = vpop.f32.mrf.mxu0
      %v1218 = vadd.f32 1e-06, %v1217
      %v1219 = vpop.f32.mrf.mxu0
      %1220 = vmatprep.mubr.f32.mxu0 0.0
      %1221 = vmatmul.mubr.f32.gmra.mxu0 %v1081
      %v1222 = vpop.f32.mrf.mxu0
      %v1223 = vadd.f32 1e-06, %v1222
      %v1224 = vpop.f32.mrf.mxu0
      %1225 = vmatprep.mubr.f32.mxu0 0.0
      %1226 = vmatmul.mubr.f32.gmra.mxu0 %v1084
      %v1227 = vpop.f32.mrf.mxu0
      %v1228 = vadd.f32 1e-06, %v1227
      %v1229 = vpop.f32.mrf.mxu0
      %1230 = vdwg.mxu0
      %v1231 = vrsqrt.pop %v1153
      %v1232 = vrsqrt.pop %v1158
      %v1233 = vrsqrt.pop %v1163
      %v1234 = vrsqrt.pop %v1168
      %v1235 = vrsqrt.pop %v1173
      %v1236 = vrsqrt.pop %v1178
      %v1237 = vrsqrt.pop %v1183
      %v1238 = vrsqrt.pop %v1188
      %v1239 = vrsqrt.pop %v1193
      %v1240 = vrsqrt.pop %v1198
      %v1241 = vrsqrt.pop %v1203
      %v1242 = vrsqrt.pop %v1208
      %v1243 = vrsqrt.pop %v1213
      %v1244 = vrsqrt.pop %v1218
      %v1245 = vrsqrt.pop %v1223
      %v1246 = vrsqrt.pop %v1228
      %v1247 = vmul.f32 %v861, %v1231
      %v1248 = vmul.f32 %v862, %v1232
      %v1249 = vmul.f32 %v863, %v1233
      %v1250 = vmul.f32 %v864, %v1234
      %v1251 = vmul.f32 %v865, %v1235
      %v1252 = vmul.f32 %v866, %v1236
      %v1253 = vmul.f32 %v867, %v1237
      %v1254 = vmul.f32 %v868, %v1238
      %v1255 = vmul.f32 %v869, %v1239
      %v1256 = vmul.f32 %v870, %v1240
      %v1257 = vmul.f32 %v871, %v1241
      %v1258 = vmul.f32 %v872, %v1242
      %v1259 = vmul.f32 %v873, %v1243
      %v1260 = vmul.f32 %v874, %v1244
      %v1261 = vmul.f32 %v875, %v1245
      %v1262 = vmul.f32 %v876, %v1246
      %v1263 = vld [vmem:[%s3] sm:$0x1]
      %v1265 = vlaneseq
      %v1266 = vshrl.u32 %v1265, 7
      %v1267 = vsub.s32 0, %v1266
      %v1268 = vrot.slane %v1263, %v1267
      %v1270 = vmul.f32 %v1247, %v1268
      %v1271 = vmul.f32 %v1248, %v1268
      %v1272 = vmul.f32 %v1249, %v1268
      %v1273 = vmul.f32 %v1250, %v1268
      %v1274 = vmul.f32 %v1251, %v1268
      %v1275 = vmul.f32 %v1252, %v1268
      %v1276 = vmul.f32 %v1253, %v1268
      %v1277 = vmul.f32 %v1254, %v1268
      %v1278 = vmul.f32 %v1255, %v1268
      %v1279 = vmul.f32 %v1256, %v1268
      %v1280 = vmul.f32 %v1257, %v1268
      %v1281 = vmul.f32 %v1258, %v1268
      %v1282 = vmul.f32 %v1259, %v1268
      %v1283 = vmul.f32 %v1260, %v1268
      %v1284 = vmul.f32 %v1261, %v1268
      %v1285 = vmul.f32 %v1262, %v1268
      %v1286 = vld [vmem:[%s4] sm:$0x1]
      %v1288 = vlaneseq
      %v1289 = vshrl.u32 %v1288, 7
      %v1290 = vsub.s32 0, %v1289
      %v1291 = vrot.slane %v1286, %v1290
      %v1293 = vadd.f32 %v1270, %v1291
      %v1294 = vadd.f32 %v1271, %v1291
      %v1295 = vadd.f32 %v1272, %v1291
      %v1296 = vadd.f32 %v1273, %v1291
      %v1297 = vadd.f32 %v1274, %v1291
      %v1298 = vadd.f32 %v1275, %v1291
      %v1299 = vadd.f32 %v1276, %v1291
      %v1300 = vadd.f32 %v1277, %v1291
      %v1301 = vadd.f32 %v1278, %v1291
      %v1302 = vadd.f32 %v1279, %v1291
      %v1303 = vadd.f32 %v1280, %v1291
      %v1304 = vadd.f32 %v1281, %v1291
      %v1305 = vadd.f32 %v1282, %v1291
      %v1306 = vadd.f32 %v1283, %v1291
      %v1307 = vadd.f32 %v1284, %v1291
      %v1308 = vadd.f32 %v1285, %v1291
      %v1309 = vmul.f32 %v1293, 0.5
      %v1310 = vmul.f32 %v1294, 0.5
      %v1311 = vmul.f32 %v1295, 0.5
      %v1312 = vmul.f32 %v1296, 0.5
      %v1313 = vmul.f32 %v1297, 0.5
      %v1314 = vmul.f32 %v1298, 0.5
      %v1315 = vmul.f32 %v1299, 0.5
      %v1316 = vmul.f32 %v1300, 0.5
      %v1317 = vmul.f32 %v1301, 0.5
      %v1318 = vmul.f32 %v1302, 0.5
      %v1319 = vmul.f32 %v1303, 0.5
      %v1320 = vmul.f32 %v1304, 0.5
      %v1321 = vmul.f32 %v1305, 0.5
      %v1322 = vmul.f32 %v1306, 0.5
      %v1323 = vmul.f32 %v1307, 0.5
      %v1324 = vmul.f32 %v1308, 0.5
      %v1325 = vmul.f32 %v1293, 0.70710677
      %v1326 = vmul.f32 %v1294, 0.70710677
      %v1327 = vmul.f32 %v1295, 0.70710677
      %v1328 = vmul.f32 %v1296, 0.70710677
      %v1329 = vmul.f32 %v1297, 0.70710677
      %v1330 = vmul.f32 %v1298, 0.70710677
      %v1331 = vmul.f32 %v1299, 0.70710677
      %v1332 = vmul.f32 %v1300, 0.70710677
      %v1333 = vmul.f32 %v1301, 0.70710677
      %v1334 = vmul.f32 %v1302, 0.70710677
      %v1335 = vmul.f32 %v1303, 0.70710677
      %v1336 = vmul.f32 %v1304, 0.70710677
      %v1337 = vmul.f32 %v1305, 0.70710677
      %v1338 = vmul.f32 %v1306, 0.70710677
      %v1339 = vmul.f32 %v1307, 0.70710677
      %v1340 = vmul.f32 %v1308, 0.70710677
      %vm1341 = vcmp.ge.f32.partialorder %v1325, 0.0
      %vm1342 = vcmp.ge.f32.partialorder %v1326, 0.0
      %vm1343 = vcmp.ge.f32.partialorder %v1327, 0.0
      %vm1344 = vcmp.ge.f32.partialorder %v1328, 0.0
      %vm1345 = vcmp.ge.f32.partialorder %v1329, 0.0
      %vm1346 = vcmp.ge.f32.partialorder %v1330, 0.0
      %vm1347 = vcmp.ge.f32.partialorder %v1331, 0.0
      %vm1348 = vcmp.ge.f32.partialorder %v1332, 0.0
      %vm1349 = vcmp.ge.f32.partialorder %v1333, 0.0
      %vm1350 = vcmp.ge.f32.partialorder %v1334, 0.0
      %vm1351 = vcmp.ge.f32.partialorder %v1335, 0.0
      %vm1352 = vcmp.ge.f32.partialorder %v1336, 0.0
      %vm1353 = vcmp.ge.f32.partialorder %v1337, 0.0
      %vm1354 = vcmp.ge.f32.partialorder %v1338, 0.0
      %vm1355 = vcmp.ge.f32.partialorder %v1339, 0.0
      %vm1356 = vcmp.ge.f32.partialorder %v1340, 0.0
      %v1357 = vsel %vm1341, 1.0, -1.0
      %v1358 = vsel %vm1342, 1.0, -1.0
      %v1359 = vsel %vm1343, 1.0, -1.0
      %v1360 = vsel %vm1344, 1.0, -1.0
      %v1361 = vsel %vm1345, 1.0, -1.0
      %v1362 = vsel %vm1346, 1.0, -1.0
      %v1363 = vsel %vm1347, 1.0, -1.0
      %v1364 = vsel %vm1348, 1.0, -1.0
      %v1365 = vsel %vm1349, 1.0, -1.0
      %v1366 = vsel %vm1350, 1.0, -1.0
      %v1367 = vsel %vm1351, 1.0, -1.0
      %v1368 = vsel %vm1352, 1.0, -1.0
      %v1369 = vsel %vm1353, 1.0, -1.0
      %v1370 = vsel %vm1354, 1.0, -1.0
      %v1371 = vsel %vm1355, 1.0, -1.0
      %v1372 = vsel %vm1356, 1.0, -1.0
      %v1373 = vand.u32 2147483647, %v1325
      %v1374 = vand.u32 2147483647, %v1326
      %v1375 = vand.u32 2147483647, %v1327
      %v1376 = vand.u32 2147483647, %v1328
      %v1377 = vand.u32 2147483647, %v1329
      %v1378 = vand.u32 2147483647, %v1330
      %v1379 = vand.u32 2147483647, %v1331
      %v1380 = vand.u32 2147483647, %v1332
      %v1381 = vand.u32 2147483647, %v1333
      %v1382 = vand.u32 2147483647, %v1334
      %v1383 = vand.u32 2147483647, %v1335
      %v1384 = vand.u32 2147483647, %v1336
      %v1385 = vand.u32 2147483647, %v1337
      %v1386 = vand.u32 2147483647, %v1338
      %v1387 = vand.u32 2147483647, %v1339
      %v1388 = vand.u32 2147483647, %v1340
      %v1389 = vmul.f32 %v1373, 0.3275911
      %v1390 = vmul.f32 %v1374, 0.3275911
      %v1391 = vmul.f32 %v1375, 0.3275911
      %v1392 = vmul.f32 %v1376, 0.3275911
      %v1393 = vmul.f32 %v1377, 0.3275911
      %v1394 = vmul.f32 %v1378, 0.3275911
      %v1395 = vmul.f32 %v1379, 0.3275911
      %v1396 = vmul.f32 %v1380, 0.3275911
      %v1397 = vmul.f32 %v1381, 0.3275911
      %v1398 = vmul.f32 %v1382, 0.3275911
      %v1399 = vmul.f32 %v1383, 0.3275911
      %v1400 = vmul.f32 %v1384, 0.3275911
      %v1401 = vmul.f32 %v1385, 0.3275911
      %v1402 = vmul.f32 %v1386, 0.3275911
      %v1403 = vmul.f32 %v1387, 0.3275911
      %v1404 = vmul.f32 %v1388, 0.3275911
      %v1405 = vadd.f32 %v1389, 1.0
      %v1406 = vadd.f32 %v1390, 1.0
      %v1407 = vadd.f32 %v1391, 1.0
      %v1408 = vadd.f32 %v1392, 1.0
      %v1409 = vadd.f32 %v1393, 1.0
      %v1410 = vadd.f32 %v1394, 1.0
      %v1411 = vadd.f32 %v1395, 1.0
      %v1412 = vadd.f32 %v1396, 1.0
      %v1413 = vadd.f32 %v1397, 1.0
      %v1414 = vadd.f32 %v1398, 1.0
      %v1415 = vadd.f32 %v1399, 1.0
      %v1416 = vadd.f32 %v1400, 1.0
      %v1417 = vadd.f32 %v1401, 1.0
      %v1418 = vadd.f32 %v1402, 1.0
      %v1419 = vadd.f32 %v1403, 1.0
      %v1420 = vadd.f32 %v1404, 1.0
      %v1421 = vrcp.pop %v1405
      %v1422 = vmul.f32 1.0, %v1421
      %v1423 = vrcp.pop %v1406
      %v1424 = vmul.f32 1.0, %v1423
      %v1425 = vrcp.pop %v1407
      %v1426 = vmul.f32 1.0, %v1425
      %v1427 = vrcp.pop %v1408
      %v1428 = vmul.f32 1.0, %v1427
      %v1429 = vrcp.pop %v1409
      %v1430 = vmul.f32 1.0, %v1429
      %v1431 = vrcp.pop %v1410
      %v1432 = vmul.f32 1.0, %v1431
      %v1433 = vrcp.pop %v1411
      %v1434 = vmul.f32 1.0, %v1433
      %v1435 = vrcp.pop %v1412
      %v1436 = vmul.f32 1.0, %v1435
      %v1437 = vrcp.pop %v1413
      %v1438 = vmul.f32 1.0, %v1437
      %v1439 = vrcp.pop %v1414
      %v1440 = vmul.f32 1.0, %v1439
      %v1441 = vrcp.pop %v1415
      %v1442 = vmul.f32 1.0, %v1441
      %v1443 = vrcp.pop %v1416
      %v1444 = vmul.f32 1.0, %v1443
      %v1445 = vrcp.pop %v1417
      %v1446 = vmul.f32 1.0, %v1445
      %v1447 = vrcp.pop %v1418
      %v1448 = vmul.f32 1.0, %v1447
      %v1449 = vrcp.pop %v1419
      %v1450 = vmul.f32 1.0, %v1449
      %v1451 = vrcp.pop %v1420
      %v1452 = vmul.f32 1.0, %v1451
      %v1453 = vmul.f32 %v1422, 1.0614054
      %v1454 = vmul.f32 %v1424, 1.0614054
      %v1455 = vmul.f32 %v1426, 1.0614054
      %v1456 = vmul.f32 %v1428, 1.0614054
      %v1457 = vmul.f32 %v1430, 1.0614054
      %v1458 = vmul.f32 %v1432, 1.0614054
      %v1459 = vmul.f32 %v1434, 1.0614054
      %v1460 = vmul.f32 %v1436, 1.0614054
      %v1461 = vmul.f32 %v1438, 1.0614054
      %v1462 = vmul.f32 %v1440, 1.0614054
      %v1463 = vmul.f32 %v1442, 1.0614054
      %v1464 = vmul.f32 %v1444, 1.0614054
      %v1465 = vmul.f32 %v1446, 1.0614054
      %v1466 = vmul.f32 %v1448, 1.0614054
      %v1467 = vmul.f32 %v1450, 1.0614054
      %v1468 = vmul.f32 %v1452, 1.0614054
      %v1469 = vadd.f32 %v1453, -1.4531521
      %v1470 = vadd.f32 %v1454, -1.4531521
      %v1471 = vadd.f32 %v1455, -1.4531521
      %v1472 = vadd.f32 %v1456, -1.4531521
      %v1473 = vadd.f32 %v1457, -1.4531521
      %v1474 = vadd.f32 %v1458, -1.4531521
      %v1475 = vadd.f32 %v1459, -1.4531521
      %v1476 = vadd.f32 %v1460, -1.4531521
      %v1477 = vadd.f32 %v1461, -1.4531521
      %v1478 = vadd.f32 %v1462, -1.4531521
      %v1479 = vadd.f32 %v1463, -1.4531521
      %v1480 = vadd.f32 %v1464, -1.4531521
      %v1481 = vadd.f32 %v1465, -1.4531521
      %v1482 = vadd.f32 %v1466, -1.4531521
      %v1483 = vadd.f32 %v1467, -1.4531521
      %v1484 = vadd.f32 %v1468, -1.4531521
      %v1485 = vmul.f32 %v1469, %v1422
      %v1486 = vmul.f32 %v1470, %v1424
      %v1487 = vmul.f32 %v1471, %v1426
      %v1488 = vmul.f32 %v1472, %v1428
      %v1489 = vmul.f32 %v1473, %v1430
      %v1490 = vmul.f32 %v1474, %v1432
      %v1491 = vmul.f32 %v1475, %v1434
      %v1492 = vmul.f32 %v1476, %v1436
      %v1493 = vmul.f32 %v1477, %v1438
      %v1494 = vmul.f32 %v1478, %v1440
      %v1495 = vmul.f32 %v1479, %v1442
      %v1496 = vmul.f32 %v1480, %v1444
      %v1497 = vmul.f32 %v1481, %v1446
      %v1498 = vmul.f32 %v1482, %v1448
      %v1499 = vmul.f32 %v1483, %v1450
      %v1500 = vmul.f32 %v1484, %v1452
      %v1501 = vadd.f32 %v1485, 1.4214138
      %v1502 = vadd.f32 %v1486, 1.4214138
      %v1503 = vadd.f32 %v1487, 1.4214138
      %v1504 = vadd.f32 %v1488, 1.4214138
      %v1505 = vadd.f32 %v1489, 1.4214138
      %v1506 = vadd.f32 %v1490, 1.4214138
      %v1507 = vadd.f32 %v1491, 1.4214138
      %v1508 = vadd.f32 %v1492, 1.4214138
      %v1509 = vadd.f32 %v1493, 1.4214138
      %v1510 = vadd.f32 %v1494, 1.4214138
      %v1511 = vadd.f32 %v1495, 1.4214138
      %v1512 = vadd.f32 %v1496, 1.4214138
      %v1513 = vadd.f32 %v1497, 1.4214138
      %v1514 = vadd.f32 %v1498, 1.4214138
      %v1515 = vadd.f32 %v1499, 1.4214138
      %v1516 = vadd.f32 %v1500, 1.4214138
      %v1517 = vmul.f32 %v1501, %v1422
      %v1518 = vmul.f32 %v1502, %v1424
      %v1519 = vmul.f32 %v1503, %v1426
      %v1520 = vmul.f32 %v1504, %v1428
      %v1521 = vmul.f32 %v1505, %v1430
      %v1522 = vmul.f32 %v1506, %v1432
      %v1523 = vmul.f32 %v1507, %v1434
      %v1524 = vmul.f32 %v1508, %v1436
      %v1525 = vmul.f32 %v1509, %v1438
      %v1526 = vmul.f32 %v1510, %v1440
      %v1527 = vmul.f32 %v1511, %v1442
      %v1528 = vmul.f32 %v1512, %v1444
      %v1529 = vmul.f32 %v1513, %v1446
      %v1530 = vmul.f32 %v1514, %v1448
      %v1531 = vmul.f32 %v1515, %v1450
      %v1532 = vmul.f32 %v1516, %v1452
      %v1533 = vadd.f32 %v1517, -0.28449672
      %v1534 = vadd.f32 %v1518, -0.28449672
      %v1535 = vadd.f32 %v1519, -0.28449672
      %v1536 = vadd.f32 %v1520, -0.28449672
      %v1537 = vadd.f32 %v1521, -0.28449672
      %v1538 = vadd.f32 %v1522, -0.28449672
      %v1539 = vadd.f32 %v1523, -0.28449672
      %v1540 = vadd.f32 %v1524, -0.28449672
      %v1541 = vadd.f32 %v1525, -0.28449672
      %v1542 = vadd.f32 %v1526, -0.28449672
      %v1543 = vadd.f32 %v1527, -0.28449672
      %v1544 = vadd.f32 %v1528, -0.28449672
      %v1545 = vadd.f32 %v1529, -0.28449672
      %v1546 = vadd.f32 %v1530, -0.28449672
      %v1547 = vadd.f32 %v1531, -0.28449672
      %v1548 = vadd.f32 %v1532, -0.28449672
      %v1549 = vmul.f32 %v1533, %v1422
      %v1550 = vmul.f32 %v1534, %v1424
      %v1551 = vmul.f32 %v1535, %v1426
      %v1552 = vmul.f32 %v1536, %v1428
      %v1553 = vmul.f32 %v1537, %v1430
      %v1554 = vmul.f32 %v1538, %v1432
      %v1555 = vmul.f32 %v1539, %v1434
      %v1556 = vmul.f32 %v1540, %v1436
      %v1557 = vmul.f32 %v1541, %v1438
      %v1558 = vmul.f32 %v1542, %v1440
      %v1559 = vmul.f32 %v1543, %v1442
      %v1560 = vmul.f32 %v1544, %v1444
      %v1561 = vmul.f32 %v1545, %v1446
      %v1562 = vmul.f32 %v1546, %v1448
      %v1563 = vmul.f32 %v1547, %v1450
      %v1564 = vmul.f32 %v1548, %v1452
      %v1565 = vadd.f32 %v1549, 0.2548296
      %v1566 = vadd.f32 %v1550, 0.2548296
      %v1567 = vadd.f32 %v1551, 0.2548296
      %v1568 = vadd.f32 %v1552, 0.2548296
      %v1569 = vadd.f32 %v1553, 0.2548296
      %v1570 = vadd.f32 %v1554, 0.2548296
      %v1571 = vadd.f32 %v1555, 0.2548296
      %v1572 = vadd.f32 %v1556, 0.2548296
      %v1573 = vadd.f32 %v1557, 0.2548296
      %v1574 = vadd.f32 %v1558, 0.2548296
      %v1575 = vadd.f32 %v1559, 0.2548296
      %v1576 = vadd.f32 %v1560, 0.2548296
      %v1577 = vadd.f32 %v1561, 0.2548296
      %v1578 = vadd.f32 %v1562, 0.2548296
      %v1579 = vadd.f32 %v1563, 0.2548296
      %v1580 = vadd.f32 %v1564, 0.2548296
      %v1581 = vmul.f32 %v1565, %v1422
      %v1582 = vmul.f32 %v1566, %v1424
      %v1583 = vmul.f32 %v1567, %v1426
      %v1584 = vmul.f32 %v1568, %v1428
      %v1585 = vmul.f32 %v1569, %v1430
      %v1586 = vmul.f32 %v1570, %v1432
      %v1587 = vmul.f32 %v1571, %v1434
      %v1588 = vmul.f32 %v1572, %v1436
      %v1589 = vmul.f32 %v1573, %v1438
      %v1590 = vmul.f32 %v1574, %v1440
      %v1591 = vmul.f32 %v1575, %v1442
      %v1592 = vmul.f32 %v1576, %v1444
      %v1593 = vmul.f32 %v1577, %v1446
      %v1594 = vmul.f32 %v1578, %v1448
      %v1595 = vmul.f32 %v1579, %v1450
      %v1596 = vmul.f32 %v1580, %v1452
      %v1597 = vsub.f32 0.0, %v1373
      %v1598 = vsub.f32 0.0, %v1374
      %v1599 = vsub.f32 0.0, %v1375
      %v1600 = vsub.f32 0.0, %v1376
      %v1601 = vsub.f32 0.0, %v1377
      %v1602 = vsub.f32 0.0, %v1378
      %v1603 = vsub.f32 0.0, %v1379
      %v1604 = vsub.f32 0.0, %v1380
      %v1605 = vsub.f32 0.0, %v1381
      %v1606 = vsub.f32 0.0, %v1382
      %v1607 = vsub.f32 0.0, %v1383
      %v1608 = vsub.f32 0.0, %v1384
      %v1609 = vsub.f32 0.0, %v1385
      %v1610 = vsub.f32 0.0, %v1386
      %v1611 = vsub.f32 0.0, %v1387
      %v1612 = vsub.f32 0.0, %v1388
      %v1613 = vmul.f32 %v1597, %v1373
      %v1614 = vmul.f32 %v1598, %v1374
      %v1615 = vmul.f32 %v1599, %v1375
      %v1616 = vmul.f32 %v1600, %v1376
      %v1617 = vmul.f32 %v1601, %v1377
      %v1618 = vmul.f32 %v1602, %v1378
      %v1619 = vmul.f32 %v1603, %v1379
      %v1620 = vmul.f32 %v1604, %v1380
      %v1621 = vmul.f32 %v1605, %v1381
      %v1622 = vmul.f32 %v1606, %v1382
      %v1623 = vmul.f32 %v1607, %v1383
      %v1624 = vmul.f32 %v1608, %v1384
      %v1625 = vmul.f32 %v1609, %v1385
      %v1626 = vmul.f32 %v1610, %v1386
      %v1627 = vmul.f32 %v1611, %v1387
      %v1628 = vmul.f32 %v1612, %v1388
      %v1629 = vmul.f32 %v1613, 1.442695
      %v1630 = vpow.pop %v1629
      %v1631 = vmul.f32 %v1614, 1.442695
      %v1632 = vpow.pop %v1631
      %v1633 = vmul.f32 %v1615, 1.442695
      %v1634 = vpow.pop %v1633
      %v1635 = vmul.f32 %v1616, 1.442695
      %v1636 = vpow.pop %v1635
      %v1637 = vmul.f32 %v1617, 1.442695
      %v1638 = vpow.pop %v1637
      %v1639 = vmul.f32 %v1618, 1.442695
      %v1640 = vpow.pop %v1639
      %v1641 = vmul.f32 %v1619, 1.442695
      %v1642 = vpow.pop %v1641
      %v1643 = vmul.f32 %v1620, 1.442695
      %v1644 = vpow.pop %v1643
      %v1645 = vmul.f32 %v1621, 1.442695
      %v1646 = vpow.pop %v1645
      %v1647 = vmul.f32 %v1622, 1.442695
      %v1648 = vpow.pop %v1647
      %v1649 = vmul.f32 %v1623, 1.442695
      %v1650 = vpow.pop %v1649
      %v1651 = vmul.f32 %v1624, 1.442695
      %v1652 = vpow.pop %v1651
      %v1653 = vmul.f32 %v1625, 1.442695
      %v1654 = vpow.pop %v1653
      %v1655 = vmul.f32 %v1626, 1.442695
      %v1656 = vpow.pop %v1655
      %v1657 = vmul.f32 %v1627, 1.442695
      %v1658 = vpow.pop %v1657
      %v1659 = vmul.f32 %v1628, 1.442695
      %v1660 = vpow.pop %v1659
      %v1661 = vmul.f32 %v1581, %v1630
      %v1662 = vmul.f32 %v1582, %v1632
      %v1663 = vmul.f32 %v1583, %v1634
      %v1664 = vmul.f32 %v1584, %v1636
      %v1665 = vmul.f32 %v1585, %v1638
      %v1666 = vmul.f32 %v1586, %v1640
      %v1667 = vmul.f32 %v1587, %v1642
      %v1668 = vmul.f32 %v1588, %v1644
      %v1669 = vmul.f32 %v1589, %v1646
      %v1670 = vmul.f32 %v1590, %v1648
      %v1671 = vmul.f32 %v1591, %v1650
      %v1672 = vmul.f32 %v1592, %v1652
      %v1673 = vmul.f32 %v1593, %v1654
      %v1674 = vmul.f32 %v1594, %v1656
      %v1675 = vmul.f32 %v1595, %v1658
      %v1676 = vmul.f32 %v1596, %v1660
      %v1677 = vsub.f32 1.0, %v1661
      %v1678 = vsub.f32 1.0, %v1662
      %v1679 = vsub.f32 1.0, %v1663
      %v1680 = vsub.f32 1.0, %v1664
      %v1681 = vsub.f32 1.0, %v1665
      %v1682 = vsub.f32 1.0, %v1666
      %v1683 = vsub.f32 1.0, %v1667
      %v1684 = vsub.f32 1.0, %v1668
      %v1685 = vsub.f32 1.0, %v1669
      %v1686 = vsub.f32 1.0, %v1670
      %v1687 = vsub.f32 1.0, %v1671
      %v1688 = vsub.f32 1.0, %v1672
      %v1689 = vsub.f32 1.0, %v1673
      %v1690 = vsub.f32 1.0, %v1674
      %v1691 = vsub.f32 1.0, %v1675
      %v1692 = vsub.f32 1.0, %v1676
      %v1693 = vmul.f32 %v1357, %v1677
      %v1694 = vmul.f32 %v1358, %v1678
      %v1695 = vmul.f32 %v1359, %v1679
      %v1696 = vmul.f32 %v1360, %v1680
      %v1697 = vmul.f32 %v1361, %v1681
      %v1698 = vmul.f32 %v1362, %v1682
      %v1699 = vmul.f32 %v1363, %v1683
      %v1700 = vmul.f32 %v1364, %v1684
      %v1701 = vmul.f32 %v1365, %v1685
      %v1702 = vmul.f32 %v1366, %v1686
      %v1703 = vmul.f32 %v1367, %v1687
      %v1704 = vmul.f32 %v1368, %v1688
      %v1705 = vmul.f32 %v1369, %v1689
      %v1706 = vmul.f32 %v1370, %v1690
      %v1707 = vmul.f32 %v1371, %v1691
      %v1708 = vmul.f32 %v1372, %v1692
      %v1709 = vadd.f32 %v1693, 1.0
      %v1710 = vadd.f32 %v1694, 1.0
      %v1711 = vadd.f32 %v1695, 1.0
      %v1712 = vadd.f32 %v1696, 1.0
      %v1713 = vadd.f32 %v1697, 1.0
      %v1714 = vadd.f32 %v1698, 1.0
      %v1715 = vadd.f32 %v1699, 1.0
      %v1716 = vadd.f32 %v1700, 1.0
      %v1717 = vadd.f32 %v1701, 1.0
      %v1718 = vadd.f32 %v1702, 1.0
      %v1719 = vadd.f32 %v1703, 1.0
      %v1720 = vadd.f32 %v1704, 1.0
      %v1721 = vadd.f32 %v1705, 1.0
      %v1722 = vadd.f32 %v1706, 1.0
      %v1723 = vadd.f32 %v1707, 1.0
      %v1724 = vadd.f32 %v1708, 1.0
      %v1725 = vmul.f32 %v1309, %v1709
      %v1726 = vmul.f32 %v1310, %v1710
      %v1727 = vmul.f32 %v1311, %v1711
      %v1728 = vmul.f32 %v1312, %v1712
      %v1729 = vmul.f32 %v1313, %v1713
      %v1730 = vmul.f32 %v1314, %v1714
      %v1731 = vmul.f32 %v1315, %v1715
      %v1732 = vmul.f32 %v1316, %v1716
      %v1733 = vmul.f32 %v1317, %v1717
      %v1734 = vmul.f32 %v1318, %v1718
      %v1735 = vmul.f32 %v1319, %v1719
      %v1736 = vmul.f32 %v1320, %v1720
      %v1737 = vmul.f32 %v1321, %v1721
      %v1738 = vmul.f32 %v1322, %v1722
      %v1739 = vmul.f32 %v1323, %v1723
      %v1740 = vmul.f32 %v1324, %v1724
      %1741 = vst [vmem:[%s280] sm:$0xff] %v1725
      %1742 = vst [vmem:[%s280 + $0x8] sm:$0xff] %v1726
      %1743 = vst [vmem:[%s280 + $0x10] sm:$0xff] %v1727
      %1744 = vst [vmem:[%s280 + $0x18] sm:$0xff] %v1728
      %1745 = vst [vmem:[%s280 + $0x20] sm:$0xff] %v1729
      %1746 = vst [vmem:[%s280 + $0x28] sm:$0xff] %v1730
      %1747 = vst [vmem:[%s280 + $0x30] sm:$0xff] %v1731
      %1748 = vst [vmem:[%s280 + $0x38] sm:$0xff] %v1732
      %1749 = vst [vmem:[%s280 + $0x40] sm:$0xff] %v1733
      %1750 = vst [vmem:[%s280 + $0x48] sm:$0xff] %v1734
      %1751 = vst [vmem:[%s280 + $0x50] sm:$0xff] %v1735
      %1752 = vst [vmem:[%s280 + $0x58] sm:$0xff] %v1736
      %1753 = vst [vmem:[%s280 + $0x60] sm:$0xff] %v1737
      %1754 = vst [vmem:[%s280 + $0x68] sm:$0xff] %v1738
      %1755 = vst [vmem:[%s280 + $0x70] sm:$0xff] %v1739
      %1756 = vst [vmem:[%s280 + $0x78] sm:$0xff] %v1740
      %s1757 = smul.u32 16, %s18
      %p1758 = scmp.lt.s32.totalorder %s1757, 31
      %s1759 = scalar_select %p1758, %s1757, 31
      %s1760 = smul.addr %s1759, 8
      %s1761 = scalar_lea.vmem %s7, %s1760
      // Predicated region
      $region49: #{fcu_down3d.1} parent=47 // pred_check
        %p1762 = pneg %p188
      $region50: #{fcu_down3d.1} parent=47 // pred_check_branch
        %1764 = sbr.rel (%p1762) target = $region52
      $region51: #{fcu_down3d.1} parent=47 // pred_region
        %s1765 = smul.u32 16, %s18
      $region52: #{fcu_down3d.1} parent=47 // pred_fallthru
        _
    $region48: #{fcu_down3d.1} parent=5 // pred_fallthru
      _
    %p1766 = scmp.le.s32.totalorder 2, %s13
    // Predicated region
    $region53: #{fcu_down3d.1} parent=5 // pred_check
      %p1767 = pneg %p1766
    $region54: #{fcu_down3d.1} parent=5 // pred_check_branch
      %1769 = sbr.rel (%p1767) target = $region56
    $region55: #{fcu_down3d.1} parent=5 // pred_region
      %s1770 = ssub.s32 %s13, 2
      // Predicated region
      $region57: #{fcu_down3d.1} parent=55 // pred_check
        %p1771 = pneg %p194
      $region58: #{fcu_down3d.1} parent=55 // pred_check_branch
        %1773 = sbr.rel (%p1771) target = $region60
      $region59: #{fcu_down3d.1} parent=55 // pred_region
        %s1774 = smul.u32 16, %s19
        %p1775 = scmp.lt.s32.totalorder %s1774, 31
        %s1776 = scalar_select %p1775, %s1774, 31
        %s1777 = smul.addr %s1776, 8
        %s1778 = scalar_lea.vmem %s7, %s1777
      $region60: #{fcu_down3d.1} parent=55 // pred_fallthru
        _
    $region56: #{fcu_down3d.1} parent=5 // pred_fallthru
      _
  $region6: #{fcu_down3d.1} parent=0 // loop_footer
    %s17 = sadd.s32 1, %s13
  $region7: #{fcu_down3d.1} parent=0 // loop_footer_branch
    %12 = sbr.rel target = $region3
  $region8: #{fcu_down3d.1} parent=0 // loop_exit
    _

</llo_original>
